<compile_context>
chip_gen: v6e
topology: v6e:2x2x1
jax: 0.10.0
libtpu: 0.0.40
codegen_flags: <defaults>
</compile_context>

<pallas_src>
import functools

import jax
import jax.numpy as jnp
from jax import lax
from jax.experimental import pallas as pl
from jax.experimental.pallas import tpu as pltpu


# ---------------------------------------------------------------------------
# Fused kernel: one grid step = one batch element (channels-last inside).
# ---------------------------------------------------------------------------
def _fused_cattn_kernel(x_ref, wqkv_ref, bqkv_ref, wc_ref, o_ref,
                        pad_ref, patch_ref, *, V, T, C):
    """x_ref:(1,V*T,C)  wqkv:(C,3C)  bqkv:(1,3C)  wc:(9C,C)  o:(1,V*T,C)
       pad_ref:(V+2,T+2,C) scratch (zero halo)   patch_ref:(V*T,9C) scratch."""
    # ---- fused q/k/v projection for all V slices at once (one MXU matmul) --
    x = x_ref[0]                                                     # (V*T, C)
    qkv = jnp.dot(x, wqkv_ref[...],
                  preferred_element_type=jnp.float32) + bqkv_ref[...]

    # zero the 1-pixel halo once; the interior is fully overwritten below
    pad_ref[...] = jnp.zeros_like(pad_ref)

    # ---- per-v channel attention: (C,C) scores, softmax over key channels --
    for v in range(V):                                   # static, unrolled
        q  = qkv[v * T:(v + 1) * T, 0 * C:1 * C]         # (T, C)
        k  = qkv[v * T:(v + 1) * T, 1 * C:2 * C]         # (T, C)
        vv = qkv[v * T:(v + 1) * T, 2 * C:3 * C]         # (T, C)

        # scores[i, j] = sum_t q[t, i] * k[t, j]                     -> (C, C)
        s = lax.dot_general(q, k, (((0,), (0,)), ((), ())),
                            preferred_element_type=jnp.float32)
        s = s - jnp.max(s, axis=-1, keepdims=True)
        e = jnp.exp(s)
        p = e * pl.reciprocal(jnp.sum(e, axis=-1, keepdims=True), approx=True)

        # out^T[t, i] = sum_j p[i, j] * vv[t, j]   (channels-last)   -> (T, C)
        out_t = lax.dot_general(vv, p, (((1,), (1,)), ((), ())),
                                preferred_element_type=jnp.float32)
        pad_ref[1 + v, 1:T + 1, :] = out_t               # into padded scratch

    # ---- 3x3 conv (padding=1, no bias) as ONE im2col matmul, K = 9C --------
    # (sigma is already folded into wc in the wrapper)
    for dv in range(3):
        for dt in range(3):
            tap = dv * 3 + dt
            patch_ref[:, tap * C:(tap + 1) * C] = (
                pad_ref[dv:dv + V, dt:dt + T, :].reshape(V * T, C))
    o_ref[0] = jnp.dot(patch_ref[...], wc_ref[...],
                       preferred_element_type=jnp.float32)           # (V*T, C)


# ---------------------------------------------------------------------------
# Wrapper
# ---------------------------------------------------------------------------
@jax.jit
def c_attn_forward(x, params):
    """x: (B, C, V, T) float32 -> (B, C, V, T) float32."""
    B, C, V, T = x.shape

    # Param prep (cheap, done in XLA): fuse q|k|v, fold sigma into conv taps.
    wqkv = jnp.concatenate([params["wq"], params["wk"], params["wv"]], axis=1)  # (C,3C)
    bqkv = jnp.concatenate([params["bq"], params["bk"], params["bv"]], axis=1)  # (1,3C)
    wc = (params["sigma"][0] * params["w_attn"]).reshape(9 * C, C)              # (9C,C)

    # channels-last, (V, T) flattened so the kernel block is a (V*T, C) slab
    x_cl = jnp.transpose(x, (0, 2, 3, 1)).reshape(B, V * T, C)

    kernel = functools.partial(_fused_cattn_kernel, V=V, T=T, C=C)
    out_cl = pl.pallas_call(
        kernel,
        out_shape=jax.ShapeDtypeStruct((B, V * T, C), jnp.float32),
        grid_spec=pltpu.PrefetchScalarGridSpec(
            num_scalar_prefetch=0,
            grid=(B,),
            in_specs=[
                pl.BlockSpec((1, V * T, C), lambda b: (b, 0, 0)),
                pl.BlockSpec((C, 3 * C), lambda b: (0, 0)),
                pl.BlockSpec((1, 3 * C), lambda b: (0, 0)),
                pl.BlockSpec((9 * C, C), lambda b: (0, 0)),
            ],
            out_specs=pl.BlockSpec((1, V * T, C), lambda b: (b, 0, 0)),
            scratch_shapes=[
                pltpu.VMEM((V + 2, T + 2, C), jnp.float32),   # padded attn out
                pltpu.VMEM((V * T, 9 * C), jnp.float32),      # im2col patch
            ],
        ),
        compiler_params=pltpu.CompilerParams(
            dimension_semantics=("parallel",),   # B axis -> v7x megacore split
        ),
    )(x_cl, wqkv, bqkv, wc)

    # TODO(synk): accepting/returning channels-last at the module boundary
    # would remove these two layout passes entirely.
    return jnp.transpose(out_cl.reshape(B, V, T, C), (0, 3, 1, 2))


# ---------------------------------------------------------------------------
# Pure-JAX reference (same math, high precision) for correctness check
# ---------------------------------------------------------------------------
def c_attn_reference(x, params):
    B, C, V, T = x.shape
    hi = lax.Precision.HIGHEST
    xc = jnp.transpose(x, (0, 2, 3, 1)).reshape(B * V, T, C)
    q = jnp.einsum("ntc,cd->ntd", xc, params["wq"], precision=hi) + params["bq"]
    k = jnp.einsum("ntc,cd->ntd", xc, params["wk"], precision=hi) + params["bk"]
    v = jnp.einsum("ntc,cd->ntd", xc, params["wv"], precision=hi) + params["bv"]
    attn = jnp.einsum("nti,ntj->nij", q, k, precision=hi)
    attn = jax.nn.softmax(attn, axis=-1)
    out = jnp.einsum("nij,ntj->nti", attn, v, precision=hi).reshape(B, V, T, C)
    xpad = jnp.pad(out, ((0, 0), (1, 1), (1, 1), (0, 0)))
    conv = jnp.zeros_like(out)
    for dv in range(3):
        for dt in range(3):
            conv = conv + jnp.einsum("bvtc,cd->bvtd",
                                     xpad[:, dv:dv + V, dt:dt + T, :],
                                     params["w_attn"][dv * 3 + dt], precision=hi)
    return jnp.transpose(params["sigma"][0] * conv, (0, 3, 1, 2))


if __name__ == "__main__":
    B, C, V, T = 2, 8, 4, 16
    key = jax.random.PRNGKey(0)
    ks = jax.random.split(key, 8)

    params = {
        "wq": 0.1 * jax.random.normal(ks[0], (C, C), jnp.float32),
        "bq": 0.1 * jax.random.normal(ks[1], (1, C), jnp.float32),
        "wk": 0.1 * jax.random.normal(ks[2], (C, C), jnp.float32),
        "bk": 0.1 * jax.random.normal(ks[3], (1, C), jnp.float32),
        "wv": 0.1 * jax.random.normal(ks[4], (C, C), jnp.float32),
        "bv": 0.1 * jax.random.normal(ks[5], (1, C), jnp.float32),
        "w_attn": 0.1 * jax.random.normal(ks[6], (9, C, C), jnp.float32),
        # nn.Parameter(torch.zeros(1)) initializes to 0; use 0.5 here so the
        # synthetic test output is non-trivial.
        "sigma": jnp.array([0.5], jnp.float32),
    }
    x = jax.random.normal(ks[7], (B, C, V, T), jnp.float32)

    out = jax.block_until_ready(c_attn_forward(x, params))
    ref = jax.block_until_ready(c_attn_reference(x, params))

    assert out.shape == (B, C, V, T)
    # tolerance slightly relaxed (2e-3) to cover the EUP-approx reciprocal in
    # the softmax normalization; everything else is f32.
    assert jnp.allclose(out, ref, rtol=2e-3, atol=2e-3), (
        f"max abs diff {jnp.max(jnp.abs(out - ref))}")
    print("KERNEL_OK")
</pallas_src>

<mosaic_0001>
module attributes {stable_mosaic.version = 11 : i64} {
  func.func @_fused_cattn_kernel(%arg0: i32, %arg1: memref<1x64x8xf32, #tpu.memory_space<vmem>>, %arg2: memref<8x24xf32, #tpu.memory_space<vmem>>, %arg3: memref<1x24xf32, #tpu.memory_space<vmem>>, %arg4: memref<72x8xf32, #tpu.memory_space<vmem>>, %arg5: memref<1x64x8xf32, #tpu.memory_space<vmem>>, %arg6: memref<6x18x8xf32, #tpu.memory_space<vmem>>, %arg7: memref<64x72xf32, #tpu.memory_space<vmem>>) attributes {dimension_semantics = [#tpu.dimension_semantics<parallel>], iteration_bounds = array<i64: 2>, scalar_prefetch = 0 : i64, scratch_operands = 2 : i64, tpu.core_type = #tpu.core_type<tc>, window_params = [{transform_indices = @transform_0, window_bounds = array<i64: 1, 64, 8>}, {pipeline_mode = #tpu.pipeline_mode<synchronous>, transform_indices = @transform_1, window_bounds = array<i64: 8, 24>}, {pipeline_mode = #tpu.pipeline_mode<synchronous>, transform_indices = @transform_2, window_bounds = array<i64: 1, 24>}, {pipeline_mode = #tpu.pipeline_mode<synchronous>, transform_indices = @transform_3, window_bounds = array<i64: 72, 8>}, {transform_indices = @transform_4, window_bounds = array<i64: 1, 64, 8>}]} {
    %c0 = arith.constant 0 : index
    %c0_0 = arith.constant 0 : index
    %c0_1 = arith.constant 0 : index
    %0 = vector.load %arg1[%c0, %c0_0, %c0_1] : memref<1x64x8xf32, #tpu.memory_space<vmem>>, vector<1x64x8xf32>
    %1 = vector.shape_cast %0 : vector<1x64x8xf32> to vector<64x8xf32>
    %c0_2 = arith.constant 0 : index
    %c0_3 = arith.constant 0 : index
    %2 = vector.load %arg2[%c0_2, %c0_3] : memref<8x24xf32, #tpu.memory_space<vmem>>, vector<8x24xf32>
    %cst = arith.constant dense<0.000000e+00> : vector<64x24xf32>
    %3 = tpu.matmul %1, %2, %cst {dimension_numbers = #tpu.dot_dimension_numbers<[1], [0], [0], [1], [0, 0, 1, 1], [], []>} : vector<64x8xf32>, vector<8x24xf32>, vector<64x24xf32> -> vector<64x24xf32>
    %c0_4 = arith.constant 0 : index
    %c0_5 = arith.constant 0 : index
    %4 = vector.load %arg3[%c0_4, %c0_5] : memref<1x24xf32, #tpu.memory_space<vmem>>, vector<1x24xf32>
    %5 = vector.broadcast %4 : vector<1x24xf32> to vector<64x24xf32>
    %6 = arith.addf %3, %5 : vector<64x24xf32>
    %cst_6 = arith.constant 0.000000e+00 : f32
    %7 = vector.broadcast %cst_6 : f32 to vector<6x18x8xf32>
    %c0_7 = arith.constant 0 : index
    %c0_8 = arith.constant 0 : index
    %c0_9 = arith.constant 0 : index
    %8 = vector.load %arg6[%c0_7, %c0_8, %c0_9] : memref<6x18x8xf32, #tpu.memory_space<vmem>>, vector<6x18x8xf32>
    tpu.vector_store %arg6[%c0_7, %c0_8, %c0_9], %7 {strides = array<i32>} : memref<6x18x8xf32, #tpu.memory_space<vmem>>, vector<6x18x8xf32>,
    %9 = vector.extract_strided_slice %6 {offsets = [0, 0], sizes = [16, 8], strides = [1, 1]} : vector<64x24xf32> to vector<16x8xf32>
    %10 = vector.extract_strided_slice %6 {offsets = [0, 8], sizes = [16, 8], strides = [1, 1]} : vector<64x24xf32> to vector<16x8xf32>
    %11 = vector.extract_strided_slice %6 {offsets = [0, 16], sizes = [16, 8], strides = [1, 1]} : vector<64x24xf32> to vector<16x8xf32>
    %cst_10 = arith.constant dense<0.000000e+00> : vector<8x8xf32>
    %12 = tpu.matmul %9, %10, %cst_10 {dimension_numbers = #tpu.dot_dimension_numbers<[0], [0], [1], [1], [0, 1, 1, 1], [], []>} : vector<16x8xf32>, vector<16x8xf32>, vector<8x8xf32> -> vector<8x8xf32>
    %cst_11 = arith.constant dense<0xFF800000> : vector<8xf32>
    %13 = vector.multi_reduction <maximumf>, %12, %cst_11 [1] : vector<8x8xf32> to vector<8xf32>
    %14 = vector.shape_cast %13 : vector<8xf32> to vector<8x1xf32>
    %15 = vector.broadcast %14 : vector<8x1xf32> to vector<8x8xf32>
    %16 = arith.subf %12, %15 : vector<8x8xf32>
    %17 = math.exp %16 : vector<8x8xf32>
    %cst_12 = arith.constant dense<0.000000e+00> : vector<8xf32>
    %18 = vector.multi_reduction <add>, %17, %cst_12 [1] : vector<8x8xf32> to vector<8xf32>
    %19 = vector.shape_cast %18 : vector<8xf32> to vector<8x1xf32>
    %20 = tpu.reciprocal %19 {approx = true} : vector<8x1xf32> -> vector<8x1xf32>
    %21 = vector.broadcast %20 : vector<8x1xf32> to vector<8x8xf32>
    %22 = arith.mulf %17, %21 : vector<8x8xf32>
    %cst_13 = arith.constant dense<0.000000e+00> : vector<16x8xf32>
    %23 = tpu.matmul %11, %22, %cst_13 {dimension_numbers = #tpu.dot_dimension_numbers<[1], [1], [0], [0], [0, 0, 1, 0], [], []>} : vector<16x8xf32>, vector<8x8xf32>, vector<16x8xf32> -> vector<16x8xf32>
    %c1 = arith.constant 1 : index
    %c1_14 = arith.constant 1 : index
    %c0_15 = arith.constant 0 : index
    %24 = vector.load %arg6[%c1, %c1_14, %c0_15] : memref<6x18x8xf32, #tpu.memory_space<vmem>>, vector<1x16x8xf32>
    %25 = vector.shape_cast %24 : vector<1x16x8xf32> to vector<16x8xf32>
    %26 = vector.shape_cast %23 : vector<16x8xf32> to vector<1x16x8xf32>
    tpu.vector_store %arg6[%c1, %c1_14, %c0_15], %26 {strides = array<i32>} : memref<6x18x8xf32, #tpu.memory_space<vmem>>, vector<1x16x8xf32>,
    %27 = vector.extract_strided_slice %6 {offsets = [16, 0], sizes = [16, 8], strides = [1, 1]} : vector<64x24xf32> to vector<16x8xf32>
    %28 = vector.extract_strided_slice %6 {offsets = [16, 8], sizes = [16, 8], strides = [1, 1]} : vector<64x24xf32> to vector<16x8xf32>
    %29 = vector.extract_strided_slice %6 {offsets = [16, 16], sizes = [16, 8], strides = [1, 1]} : vector<64x24xf32> to vector<16x8xf32>
    %cst_16 = arith.constant dense<0.000000e+00> : vector<8x8xf32>
    %30 = tpu.matmul %27, %28, %cst_16 {dimension_numbers = #tpu.dot_dimension_numbers<[0], [0], [1], [1], [0, 1, 1, 1], [], []>} : vector<16x8xf32>, vector<16x8xf32>, vector<8x8xf32> -> vector<8x8xf32>
    %cst_17 = arith.constant dense<0xFF800000> : vector<8xf32>
    %31 = vector.multi_reduction <maximumf>, %30, %cst_17 [1] : vector<8x8xf32> to vector<8xf32>
    %32 = vector.shape_cast %31 : vector<8xf32> to vector<8x1xf32>
    %33 = vector.broadcast %32 : vector<8x1xf32> to vector<8x8xf32>
    %34 = arith.subf %30, %33 : vector<8x8xf32>
    %35 = math.exp %34 : vector<8x8xf32>
    %cst_18 = arith.constant dense<0.000000e+00> : vector<8xf32>
    %36 = vector.multi_reduction <add>, %35, %cst_18 [1] : vector<8x8xf32> to vector<8xf32>
    %37 = vector.shape_cast %36 : vector<8xf32> to vector<8x1xf32>
    %38 = tpu.reciprocal %37 {approx = true} : vector<8x1xf32> -> vector<8x1xf32>
    %39 = vector.broadcast %38 : vector<8x1xf32> to vector<8x8xf32>
    %40 = arith.mulf %35, %39 : vector<8x8xf32>
    %cst_19 = arith.constant dense<0.000000e+00> : vector<16x8xf32>
    %41 = tpu.matmul %29, %40, %cst_19 {dimension_numbers = #tpu.dot_dimension_numbers<[1], [1], [0], [0], [0, 0, 1, 0], [], []>} : vector<16x8xf32>, vector<8x8xf32>, vector<16x8xf32> -> vector<16x8xf32>
    %c2 = arith.constant 2 : index
    %c1_20 = arith.constant 1 : index
    %c0_21 = arith.constant 0 : index
    %42 = vector.load %arg6[%c2, %c1_20, %c0_21] : memref<6x18x8xf32, #tpu.memory_space<vmem>>, vector<1x16x8xf32>
    %43 = vector.shape_cast %42 : vector<1x16x8xf32> to vector<16x8xf32>
    %44 = vector.shape_cast %41 : vector<16x8xf32> to vector<1x16x8xf32>
    tpu.vector_store %arg6[%c2, %c1_20, %c0_21], %44 {strides = array<i32>} : memref<6x18x8xf32, #tpu.memory_space<vmem>>, vector<1x16x8xf32>,
    %45 = vector.extract_strided_slice %6 {offsets = [32, 0], sizes = [16, 8], strides = [1, 1]} : vector<64x24xf32> to vector<16x8xf32>
    %46 = vector.extract_strided_slice %6 {offsets = [32, 8], sizes = [16, 8], strides = [1, 1]} : vector<64x24xf32> to vector<16x8xf32>
    %47 = vector.extract_strided_slice %6 {offsets = [32, 16], sizes = [16, 8], strides = [1, 1]} : vector<64x24xf32> to vector<16x8xf32>
    %cst_22 = arith.constant dense<0.000000e+00> : vector<8x8xf32>
    %48 = tpu.matmul %45, %46, %cst_22 {dimension_numbers = #tpu.dot_dimension_numbers<[0], [0], [1], [1], [0, 1, 1, 1], [], []>} : vector<16x8xf32>, vector<16x8xf32>, vector<8x8xf32> -> vector<8x8xf32>
    %cst_23 = arith.constant dense<0xFF800000> : vector<8xf32>
    %49 = vector.multi_reduction <maximumf>, %48, %cst_23 [1] : vector<8x8xf32> to vector<8xf32>
    %50 = vector.shape_cast %49 : vector<8xf32> to vector<8x1xf32>
    %51 = vector.broadcast %50 : vector<8x1xf32> to vector<8x8xf32>
    %52 = arith.subf %48, %51 : vector<8x8xf32>
    %53 = math.exp %52 : vector<8x8xf32>
    %cst_24 = arith.constant dense<0.000000e+00> : vector<8xf32>
    %54 = vector.multi_reduction <add>, %53, %cst_24 [1] : vector<8x8xf32> to vector<8xf32>
    %55 = vector.shape_cast %54 : vector<8xf32> to vector<8x1xf32>
    %56 = tpu.reciprocal %55 {approx = true} : vector<8x1xf32> -> vector<8x1xf32>
    %57 = vector.broadcast %56 : vector<8x1xf32> to vector<8x8xf32>
    %58 = arith.mulf %53, %57 : vector<8x8xf32>
    %cst_25 = arith.constant dense<0.000000e+00> : vector<16x8xf32>
    %59 = tpu.matmul %47, %58, %cst_25 {dimension_numbers = #tpu.dot_dimension_numbers<[1], [1], [0], [0], [0, 0, 1, 0], [], []>} : vector<16x8xf32>, vector<8x8xf32>, vector<16x8xf32> -> vector<16x8xf32>
    %c3 = arith.constant 3 : index
    %c1_26 = arith.constant 1 : index
    %c0_27 = arith.constant 0 : index
    %60 = vector.load %arg6[%c3, %c1_26, %c0_27] : memref<6x18x8xf32, #tpu.memory_space<vmem>>, vector<1x16x8xf32>
    %61 = vector.shape_cast %60 : vector<1x16x8xf32> to vector<16x8xf32>
    %62 = vector.shape_cast %59 : vector<16x8xf32> to vector<1x16x8xf32>
    tpu.vector_store %arg6[%c3, %c1_26, %c0_27], %62 {strides = array<i32>} : memref<6x18x8xf32, #tpu.memory_space<vmem>>, vector<1x16x8xf32>,
    %63 = vector.extract_strided_slice %6 {offsets = [48, 0], sizes = [16, 8], strides = [1, 1]} : vector<64x24xf32> to vector<16x8xf32>
    %64 = vector.extract_strided_slice %6 {offsets = [48, 8], sizes = [16, 8], strides = [1, 1]} : vector<64x24xf32> to vector<16x8xf32>
    %65 = vector.extract_strided_slice %6 {offsets = [48, 16], sizes = [16, 8], strides = [1, 1]} : vector<64x24xf32> to vector<16x8xf32>
    %cst_28 = arith.constant dense<0.000000e+00> : vector<8x8xf32>
    %66 = tpu.matmul %63, %64, %cst_28 {dimension_numbers = #tpu.dot_dimension_numbers<[0], [0], [1], [1], [0, 1, 1, 1], [], []>} : vector<16x8xf32>, vector<16x8xf32>, vector<8x8xf32> -> vector<8x8xf32>
    %cst_29 = arith.constant dense<0xFF800000> : vector<8xf32>
    %67 = vector.multi_reduction <maximumf>, %66, %cst_29 [1] : vector<8x8xf32> to vector<8xf32>
    %68 = vector.shape_cast %67 : vector<8xf32> to vector<8x1xf32>
    %69 = vector.broadcast %68 : vector<8x1xf32> to vector<8x8xf32>
    %70 = arith.subf %66, %69 : vector<8x8xf32>
    %71 = math.exp %70 : vector<8x8xf32>
    %cst_30 = arith.constant dense<0.000000e+00> : vector<8xf32>
    %72 = vector.multi_reduction <add>, %71, %cst_30 [1] : vector<8x8xf32> to vector<8xf32>
    %73 = vector.shape_cast %72 : vector<8xf32> to vector<8x1xf32>
    %74 = tpu.reciprocal %73 {approx = true} : vector<8x1xf32> -> vector<8x1xf32>
    %75 = vector.broadcast %74 : vector<8x1xf32> to vector<8x8xf32>
    %76 = arith.mulf %71, %75 : vector<8x8xf32>
    %cst_31 = arith.constant dense<0.000000e+00> : vector<16x8xf32>
    %77 = tpu.matmul %65, %76, %cst_31 {dimension_numbers = #tpu.dot_dimension_numbers<[1], [1], [0], [0], [0, 0, 1, 0], [], []>} : vector<16x8xf32>, vector<8x8xf32>, vector<16x8xf32> -> vector<16x8xf32>
    %c4 = arith.constant 4 : index
    %c1_32 = arith.constant 1 : index
    %c0_33 = arith.constant 0 : index
    %78 = vector.load %arg6[%c4, %c1_32, %c0_33] : memref<6x18x8xf32, #tpu.memory_space<vmem>>, vector<1x16x8xf32>
    %79 = vector.shape_cast %78 : vector<1x16x8xf32> to vector<16x8xf32>
    %80 = vector.shape_cast %77 : vector<16x8xf32> to vector<1x16x8xf32>
    tpu.vector_store %arg6[%c4, %c1_32, %c0_33], %80 {strides = array<i32>} : memref<6x18x8xf32, #tpu.memory_space<vmem>>, vector<1x16x8xf32>,
    %c0_34 = arith.constant 0 : index
    %c0_35 = arith.constant 0 : index
    %c0_36 = arith.constant 0 : index
    %81 = vector.load %arg6[%c0_34, %c0_35, %c0_36] : memref<6x18x8xf32, #tpu.memory_space<vmem>>, vector<4x16x8xf32>
    %82 = vector.shape_cast %81 : vector<4x16x8xf32> to vector<64x8xf32>
    %c0_37 = arith.constant 0 : index
    %c0_38 = arith.constant 0 : index
    %83 = vector.load %arg7[%c0_37, %c0_38] : memref<64x72xf32, #tpu.memory_space<vmem>>, vector<64x8xf32>
    tpu.vector_store %arg7[%c0_37, %c0_38], %82 {strides = array<i32>} : memref<64x72xf32, #tpu.memory_space<vmem>>, vector<64x8xf32>,
    %c0_39 = arith.constant 0 : index
    %c1_40 = arith.constant 1 : index
    %c0_41 = arith.constant 0 : index
    %84 = vector.load %arg6[%c0_39, %c1_40, %c0_41] : memref<6x18x8xf32, #tpu.memory_space<vmem>>, vector<4x16x8xf32>
    %85 = vector.shape_cast %84 : vector<4x16x8xf32> to vector<64x8xf32>
    %c0_42 = arith.constant 0 : index
    %c8 = arith.constant 8 : index
    %86 = vector.load %arg7[%c0_42, %c8] : memref<64x72xf32, #tpu.memory_space<vmem>>, vector<64x8xf32>
    tpu.vector_store %arg7[%c0_42, %c8], %85 {strides = array<i32>} : memref<64x72xf32, #tpu.memory_space<vmem>>, vector<64x8xf32>,
    %c0_43 = arith.constant 0 : index
    %c2_44 = arith.constant 2 : index
    %c0_45 = arith.constant 0 : index
    %87 = vector.load %arg6[%c0_43, %c2_44, %c0_45] : memref<6x18x8xf32, #tpu.memory_space<vmem>>, vector<4x16x8xf32>
    %88 = vector.shape_cast %87 : vector<4x16x8xf32> to vector<64x8xf32>
    %c0_46 = arith.constant 0 : index
    %c16 = arith.constant 16 : index
    %89 = vector.load %arg7[%c0_46, %c16] : memref<64x72xf32, #tpu.memory_space<vmem>>, vector<64x8xf32>
    tpu.vector_store %arg7[%c0_46, %c16], %88 {strides = array<i32>} : memref<64x72xf32, #tpu.memory_space<vmem>>, vector<64x8xf32>,
    %c1_47 = arith.constant 1 : index
    %c0_48 = arith.constant 0 : index
    %c0_49 = arith.constant 0 : index
    %90 = vector.load %arg6[%c1_47, %c0_48, %c0_49] : memref<6x18x8xf32, #tpu.memory_space<vmem>>, vector<4x16x8xf32>
    %91 = vector.shape_cast %90 : vector<4x16x8xf32> to vector<64x8xf32>
    %c0_50 = arith.constant 0 : index
    %c24 = arith.constant 24 : index
    %92 = vector.load %arg7[%c0_50, %c24] : memref<64x72xf32, #tpu.memory_space<vmem>>, vector<64x8xf32>
    tpu.vector_store %arg7[%c0_50, %c24], %91 {strides = array<i32>} : memref<64x72xf32, #tpu.memory_space<vmem>>, vector<64x8xf32>,
    %c1_51 = arith.constant 1 : index
    %c1_52 = arith.constant 1 : index
    %c0_53 = arith.constant 0 : index
    %93 = vector.load %arg6[%c1_51, %c1_52, %c0_53] : memref<6x18x8xf32, #tpu.memory_space<vmem>>, vector<4x16x8xf32>
    %94 = vector.shape_cast %93 : vector<4x16x8xf32> to vector<64x8xf32>
    %c0_54 = arith.constant 0 : index
    %c32 = arith.constant 32 : index
    %95 = vector.load %arg7[%c0_54, %c32] : memref<64x72xf32, #tpu.memory_space<vmem>>, vector<64x8xf32>
    tpu.vector_store %arg7[%c0_54, %c32], %94 {strides = array<i32>} : memref<64x72xf32, #tpu.memory_space<vmem>>, vector<64x8xf32>,
    %c1_55 = arith.constant 1 : index
    %c2_56 = arith.constant 2 : index
    %c0_57 = arith.constant 0 : index
    %96 = vector.load %arg6[%c1_55, %c2_56, %c0_57] : memref<6x18x8xf32, #tpu.memory_space<vmem>>, vector<4x16x8xf32>
    %97 = vector.shape_cast %96 : vector<4x16x8xf32> to vector<64x8xf32>
    %c0_58 = arith.constant 0 : index
    %c40 = arith.constant 40 : index
    %98 = vector.load %arg7[%c0_58, %c40] : memref<64x72xf32, #tpu.memory_space<vmem>>, vector<64x8xf32>
    tpu.vector_store %arg7[%c0_58, %c40], %97 {strides = array<i32>} : memref<64x72xf32, #tpu.memory_space<vmem>>, vector<64x8xf32>,
    %c2_59 = arith.constant 2 : index
    %c0_60 = arith.constant 0 : index
    %c0_61 = arith.constant 0 : index
    %99 = vector.load %arg6[%c2_59, %c0_60, %c0_61] : memref<6x18x8xf32, #tpu.memory_space<vmem>>, vector<4x16x8xf32>
    %100 = vector.shape_cast %99 : vector<4x16x8xf32> to vector<64x8xf32>
    %c0_62 = arith.constant 0 : index
    %c48 = arith.constant 48 : index
    %101 = vector.load %arg7[%c0_62, %c48] : memref<64x72xf32, #tpu.memory_space<vmem>>, vector<64x8xf32>
    tpu.vector_store %arg7[%c0_62, %c48], %100 {strides = array<i32>} : memref<64x72xf32, #tpu.memory_space<vmem>>, vector<64x8xf32>,
    %c2_63 = arith.constant 2 : index
    %c1_64 = arith.constant 1 : index
    %c0_65 = arith.constant 0 : index
    %102 = vector.load %arg6[%c2_63, %c1_64, %c0_65] : memref<6x18x8xf32, #tpu.memory_space<vmem>>, vector<4x16x8xf32>
    %103 = vector.shape_cast %102 : vector<4x16x8xf32> to vector<64x8xf32>
    %c0_66 = arith.constant 0 : index
    %c56 = arith.constant 56 : index
    %104 = vector.load %arg7[%c0_66, %c56] : memref<64x72xf32, #tpu.memory_space<vmem>>, vector<64x8xf32>
    tpu.vector_store %arg7[%c0_66, %c56], %103 {strides = array<i32>} : memref<64x72xf32, #tpu.memory_space<vmem>>, vector<64x8xf32>,
    %c2_67 = arith.constant 2 : index
    %c2_68 = arith.constant 2 : index
    %c0_69 = arith.constant 0 : index
    %105 = vector.load %arg6[%c2_67, %c2_68, %c0_69] : memref<6x18x8xf32, #tpu.memory_space<vmem>>, vector<4x16x8xf32>
    %106 = vector.shape_cast %105 : vector<4x16x8xf32> to vector<64x8xf32>
    %c0_70 = arith.constant 0 : index
    %c64 = arith.constant 64 : index
    %107 = vector.load %arg7[%c0_70, %c64] : memref<64x72xf32, #tpu.memory_space<vmem>>, vector<64x8xf32>
    tpu.vector_store %arg7[%c0_70, %c64], %106 {strides = array<i32>} : memref<64x72xf32, #tpu.memory_space<vmem>>, vector<64x8xf32>,
    %c0_71 = arith.constant 0 : index
    %c0_72 = arith.constant 0 : index
    %108 = vector.load %arg7[%c0_71, %c0_72] : memref<64x72xf32, #tpu.memory_space<vmem>>, vector<64x72xf32>
    %c0_73 = arith.constant 0 : index
    %c0_74 = arith.constant 0 : index
    %109 = vector.load %arg4[%c0_73, %c0_74] : memref<72x8xf32, #tpu.memory_space<vmem>>, vector<72x8xf32>
    %cst_75 = arith.constant dense<0.000000e+00> : vector<64x8xf32>
    %110 = tpu.matmul %108, %109, %cst_75 {dimension_numbers = #tpu.dot_dimension_numbers<[1], [0], [0], [1], [0, 0, 1, 1], [], []>} : vector<64x72xf32>, vector<72x8xf32>, vector<64x8xf32> -> vector<64x8xf32>
    %c0_76 = arith.constant 0 : index
    %c0_77 = arith.constant 0 : index
    %c0_78 = arith.constant 0 : index
    %111 = vector.load %arg5[%c0_76, %c0_77, %c0_78] : memref<1x64x8xf32, #tpu.memory_space<vmem>>, vector<1x64x8xf32>
    %112 = vector.shape_cast %111 : vector<1x64x8xf32> to vector<64x8xf32>
    %113 = vector.shape_cast %110 : vector<64x8xf32> to vector<1x64x8xf32>
    tpu.vector_store %arg5[%c0_76, %c0_77, %c0_78], %113 {strides = array<i32>} : memref<1x64x8xf32, #tpu.memory_space<vmem>>, vector<1x64x8xf32>,
    return
  }
  func.func @transform_0(%arg0: i32) -> (i32, i32, i32) {
    %c0_i32 = arith.constant 0 : i32
    %c0_i32_0 = arith.constant 0 : i32
    %c0_i32_1 = arith.constant 0 : i32
    return %arg0, %c0_i32, %c0_i32_0 : i32, i32, i32
  }
  func.func @transform_1(%arg0: i32) -> (i32, i32) {
    %c0_i32 = arith.constant 0 : i32
    %c0_i32_0 = arith.constant 0 : i32
    %c0_i32_1 = arith.constant 0 : i32
    return %c0_i32, %c0_i32_0 : i32, i32
  }
  func.func @transform_2(%arg0: i32) -> (i32, i32) {
    %c0_i32 = arith.constant 0 : i32
    %c0_i32_0 = arith.constant 0 : i32
    %c0_i32_1 = arith.constant 0 : i32
    return %c0_i32, %c0_i32_0 : i32, i32
  }
  func.func @transform_3(%arg0: i32) -> (i32, i32) {
    %c0_i32 = arith.constant 0 : i32
    %c0_i32_0 = arith.constant 0 : i32
    %c0_i32_1 = arith.constant 0 : i32
    return %c0_i32, %c0_i32_0 : i32, i32
  }
  func.func @transform_4(%arg0: i32) -> (i32, i32, i32) {
    %c0_i32 = arith.constant 0 : i32
    %c0_i32_0 = arith.constant 0 : i32
    %c0_i32_1 = arith.constant 0 : i32
    return %arg0, %c0_i32, %c0_i32_0 : i32, i32, i32
  }
}

</mosaic_0001>

<llo_original>
// kernel: c_attn_forward.1
$region0: #{c_attn_forward.1}
  #allocation0 [shape = 'u32[]', space=smem, size = 0x4, offset = 0x4, fixed_abs, tag = 'smem constant byte address 0x4 - core index']
  #allocation1 [shape = 'u32[144,128]{1,0:T(1,128)}', space=vmem, size = 0x12000, scoped, tag = 'internal scratch']
  #allocation2 [shape = 'f32[6,18,8]{2,1,0:T(8,128)}', space=vmem, size = 0x12000, scoped, tag = 'scratch operand']
  #allocation3 [shape = 'f32[64,72]{1,0:T(8,128)}', space=vmem, size = 0x8000, scoped, tag = 'scratch operand']
  %s0 = inlined_call_operand.vmem [shape: f32[2,64,8], index: 0, kind: input, shape index: {}]
  %s1 = inlined_call_operand.vmem [shape: f32[8,24], index: 1, kind: input, shape index: {}]
  %s2 = inlined_call_operand.vmem [shape: f32[1,24], index: 2, kind: input, shape index: {}]
  %s3 = inlined_call_operand.vmem [shape: f32[72,8], index: 3, kind: input, shape index: {}]
  %s4 = inlined_call_operand.vmem [shape: f32[2,64,8], index: 4, kind: output, shape index: {}]
  %s5 = sld [smem:[#allocation0]]
  $region49: #{c_attn_forward.1} parent=0
    _
  %s7 = ssub.s32 1, %s5
  %s8 = scalar_select 0, %s7, %s5
  loop: start=0, step=1, limit=4
  $region2: #{c_attn_forward.1} parent=0 // loop_pre_header
    _
  $region3: #{c_attn_forward.1} parent=0 // loop_header
    %s10 = sphi 0, %s14
    %p11 = scmp.ge.s32.totalorder %s10, 4
    %s20 = sphi 0, %s22
    %s23 = sphi 0, %s20
    %s24 = sphi 0, %s23
    %s40 = sphi 0, %s24
    %s44 = sphi 0, %s44
    %s46 = sphi 0, %s44
    %s47 = sphi 0, %s46
    %s61 = sphi 0, %s47
    %s65 = sphi 0, %s65
    %s67 = sphi 0, %s65
    %s68 = sphi 0, %s67
    %s82 = sphi 0, %s68
    %s86 = sphi 0, %s86
    %s88 = sphi 0, %s86
    %s89 = sphi 0, %s88
    %s103 = sphi 0, %s89
    %s109 = sphi 0, %s111
    %s112 = sphi 0, %s109
    %s113 = sphi 0, %s112
    %s129 = sphi 0, %s113
  $region4: #{c_attn_forward.1} parent=0 // loop_header_branch
    %13 = sbr.rel (%p11) target = $region8
  $region5: #{c_attn_forward.1} parent=0 // loop_body
    %s15 = ssub.s32 %s10, 1
    %s16 = ssub.s32 %s10, 2
    %s17 = sadd.s32 %s10, 1
    %s18 = ssub.s32 %s10, %s17
    %p19 = scmp.eq.s32.totalorder %s18, 0
    %s21 = sadd.s32 %s20, 1
    %s22 = scalar_select %p19, %s20, %s21
    %p25 = pneg %p19
    %p26 = scmp.eq.s32.totalorder %s10, 1
    %p27 = por %p25, %p26
    %p28 = scmp.ne.s32.totalorder %s20, %s23
    %p29 = scmp.eq.s32.totalorder %s10, 0
    %p30 = por %p28, %p29
    %p31 = scmp.ne.s32.totalorder %s20, %s23
    %p32 = scmp.eq.s32.totalorder %s15, 1
    %p33 = por %p31, %p32
    %p34 = scmp.ne.s32.totalorder %s23, %s24
    %p35 = scmp.eq.s32.totalorder %s15, 0
    %p36 = por %p34, %p35
    %p37 = scmp.ne.s32.totalorder %s23, %s24
    %p38 = scmp.eq.s32.totalorder %s16, 1
    %p39 = por %p37, %p38
    %p41 = scmp.ne.s32.totalorder %s24, %s40
    %p42 = scmp.eq.s32.totalorder %s16, 0
    %p43 = por %p41, %p42
    %s45 = sadd.s32 %s44, 1
    %p48 = scmp.eq.s32.totalorder %s10, 1
    %p49 = scmp.ne.s32.totalorder %s44, %s46
    %p50 = scmp.eq.s32.totalorder %s10, 0
    %p51 = por %p49, %p50
    %p52 = scmp.ne.s32.totalorder %s44, %s46
    %p53 = scmp.eq.s32.totalorder %s15, 1
    %p54 = por %p52, %p53
    %p55 = scmp.ne.s32.totalorder %s46, %s47
    %p56 = scmp.eq.s32.totalorder %s15, 0
    %p57 = por %p55, %p56
    %p58 = scmp.ne.s32.totalorder %s46, %s47
    %p59 = scmp.eq.s32.totalorder %s16, 1
    %p60 = por %p58, %p59
    %p62 = scmp.ne.s32.totalorder %s47, %s61
    %p63 = scmp.eq.s32.totalorder %s16, 0
    %p64 = por %p62, %p63
    %s66 = sadd.s32 %s65, 1
    %p69 = scmp.eq.s32.totalorder %s10, 1
    %p70 = scmp.ne.s32.totalorder %s65, %s67
    %p71 = scmp.eq.s32.totalorder %s10, 0
    %p72 = por %p70, %p71
    %p73 = scmp.ne.s32.totalorder %s65, %s67
    %p74 = scmp.eq.s32.totalorder %s15, 1
    %p75 = por %p73, %p74
    %p76 = scmp.ne.s32.totalorder %s67, %s68
    %p77 = scmp.eq.s32.totalorder %s15, 0
    %p78 = por %p76, %p77
    %p79 = scmp.ne.s32.totalorder %s67, %s68
    %p80 = scmp.eq.s32.totalorder %s16, 1
    %p81 = por %p79, %p80
    %p83 = scmp.ne.s32.totalorder %s68, %s82
    %p84 = scmp.eq.s32.totalorder %s16, 0
    %p85 = por %p83, %p84
    %s87 = sadd.s32 %s86, 1
    %p90 = scmp.eq.s32.totalorder %s10, 1
    %p91 = scmp.ne.s32.totalorder %s86, %s88
    %p92 = scmp.eq.s32.totalorder %s10, 0
    %p93 = por %p91, %p92
    %p94 = scmp.ne.s32.totalorder %s86, %s88
    %p95 = scmp.eq.s32.totalorder %s15, 1
    %p96 = por %p94, %p95
    %p97 = scmp.ne.s32.totalorder %s88, %s89
    %p98 = scmp.eq.s32.totalorder %s15, 0
    %p99 = por %p97, %p98
    %p100 = scmp.ne.s32.totalorder %s88, %s89
    %p101 = scmp.eq.s32.totalorder %s16, 1
    %p102 = por %p100, %p101
    %p104 = scmp.ne.s32.totalorder %s89, %s103
    %p105 = scmp.eq.s32.totalorder %s16, 0
    %p106 = por %p104, %p105
    %s107 = ssub.s32 %s10, %s17
    %p108 = scmp.eq.s32.totalorder %s107, 0
    %s110 = sadd.s32 %s109, 1
    %s111 = scalar_select %p108, %s109, %s110
    %p114 = pneg %p108
    %p115 = scmp.eq.s32.totalorder %s10, 1
    %p116 = por %p114, %p115
    %p117 = scmp.ne.s32.totalorder %s109, %s112
    %p118 = scmp.eq.s32.totalorder %s10, 0
    %p119 = por %p117, %p118
    %p120 = scmp.ne.s32.totalorder %s109, %s112
    %p121 = scmp.eq.s32.totalorder %s15, 1
    %p122 = por %p120, %p121
    %p123 = scmp.ne.s32.totalorder %s112, %s113
    %p124 = scmp.eq.s32.totalorder %s15, 0
    %p125 = por %p123, %p124
    %p126 = scmp.ne.s32.totalorder %s112, %s113
    %p127 = scmp.eq.s32.totalorder %s16, 1
    %p128 = por %p126, %p127
    %p130 = scmp.ne.s32.totalorder %s113, %s129
    %p131 = scmp.eq.s32.totalorder %s16, 0
    %p132 = por %p130, %p131
    %p133 = scmp.le.s32.totalorder 1, %s10
    %p134 = scmp.lt.s32.totalorder %s10, 3
    %p135 = pnand %p133, %p134
    %p136 = pneg %p135
    // Predicated region
    $region9: #{c_attn_forward.1} parent=5 // pred_check
      _
    $region10: #{c_attn_forward.1} parent=5 // pred_check_branch
      %138 = sbr.rel (%p135) target = $region12
    $region11: #{c_attn_forward.1} parent=5 // pred_region
      %s139 = ssub.s32 %s10, 1
      // Predicated region
      $region13: #{c_attn_forward.1} parent=11 // pred_check
        %p140 = pneg %p57
      $region14: #{c_attn_forward.1} parent=11 // pred_check_branch
        %142 = sbr.rel (%p140) target = $region16
      $region15: #{c_attn_forward.1} parent=11 // pred_region
        _
      $region16: #{c_attn_forward.1} parent=11 // pred_fallthru
        _
      // Predicated region
      $region17: #{c_attn_forward.1} parent=11 // pred_check
        %p143 = pneg %p78
      $region18: #{c_attn_forward.1} parent=11 // pred_check_branch
        %145 = sbr.rel (%p143) target = $region20
      $region19: #{c_attn_forward.1} parent=11 // pred_region
        _
      $region20: #{c_attn_forward.1} parent=11 // pred_fallthru
        _
      // Predicated region
      $region21: #{c_attn_forward.1} parent=11 // pred_check
        %p146 = pneg %p99
      $region22: #{c_attn_forward.1} parent=11 // pred_check_branch
        %148 = sbr.rel (%p146) target = $region24
      $region23: #{c_attn_forward.1} parent=11 // pred_region
        _
      $region24: #{c_attn_forward.1} parent=11 // pred_fallthru
        _
    $region12: #{c_attn_forward.1} parent=5 // pred_fallthru
      _
    %p149 = scmp.lt.s32.totalorder %s10, 2
    // Predicated region
    $region25: #{c_attn_forward.1} parent=5 // pred_check
      %p150 = pneg %p149
    $region26: #{c_attn_forward.1} parent=5 // pred_check_branch
      %152 = sbr.rel (%p150) target = $region28
    $region27: #{c_attn_forward.1} parent=5 // pred_region
      // Predicated region
      $region29: #{c_attn_forward.1} parent=27 // pred_check
        %p153 = pneg %p30
      $region30: #{c_attn_forward.1} parent=27 // pred_check_branch
        %155 = sbr.rel (%p153) target = $region32
      $region31: #{c_attn_forward.1} parent=27 // pred_region
        %p156 = scmp.lt.s32.totalorder %s10, 1
        %s157 = scalar_select %p156, %s10, 1
        %s158 = smul.addr %s157, 8
        %s159 = smul.addr %s158, 8
        %s160 = scalar_lea.vmem %s0, %s159
      $region32: #{c_attn_forward.1} parent=27 // pred_fallthru
        _
    $region28: #{c_attn_forward.1} parent=5 // pred_fallthru
      _
    %p161 = scmp.le.s32.totalorder 1, %s10
    %p162 = scmp.lt.s32.totalorder %s10, 3
    %p163 = pnand %p161, %p162
    %p164 = pneg %p163
    // Predicated region
    $region33: #{c_attn_forward.1} parent=5 // pred_check
      _
    $region34: #{c_attn_forward.1} parent=5 // pred_check_branch
      %166 = sbr.rel (%p163) target = $region36
    $region35: #{c_attn_forward.1} parent=5 // pred_region
      %s167 = ssub.s32 %s10, 1
      %p168 = scmp.lt.s32.totalorder %s15, 1
      %s169 = scalar_select %p168, %s15, 1
      %s170 = smul.addr %s169, 8
      %s171 = smul.addr %s170, 8
      %s172 = scalar_lea.vmem %s0, %s171
      %p173 = pneg %p36
      %p174 = pneg %p33
      %p175 = pneg %p57
      %p176 = pneg %p54
      %p177 = pneg %p78
      %p178 = pneg %p75
      %p179 = pneg %p99
      %p180 = pneg %p96
      %p181 = pneg %p125
      %p182 = pneg %p122
      %p183 = scmp.lt.s32.totalorder %s15, 1
      %s184 = scalar_select %p183, %s15, 1
      %s185 = smul.addr %s184, 8
      %s186 = smul.addr %s185, 8
      %s187 = scalar_lea.vmem %s4, %s186
      %p188 = scmp.lt.s32.totalorder %s15, 1
      %s189 = scalar_select %p188, %s15, 1
      %s190 = smul.addr %s189, 8
      %s191 = smul.addr %s190, 8
      %s192 = scalar_lea.vmem %s0, %s191
      %p193 = scmp.lt.s32.totalorder %s15, 1
      %s194 = scalar_select %p193, %s15, 1
      %s195 = smul.addr %s194, 8
      %s196 = smul.addr %s195, 8
      %s197 = scalar_lea.vmem %s4, %s196
      %v198 = vld [vmem:[%s192] sm:$0xff]
      %v199 = vld [vmem:[%s192 + $0x8] sm:$0xff]
      %v200 = vld [vmem:[%s192 + $0x10] sm:$0xff]
      %v201 = vld [vmem:[%s192 + $0x18] sm:$0xff]
      %v202 = vld [vmem:[%s192 + $0x20] sm:$0xff]
      %v203 = vld [vmem:[%s192 + $0x28] sm:$0xff]
      %v204 = vld [vmem:[%s192 + $0x30] sm:$0xff]
      %v205 = vld [vmem:[%s192 + $0x38] sm:$0xff]
      %v206 = vld [vmem:[%s1] sm:$0xff]
      %v207 = vld [vmem:[%s2] sm:$0x1]
      %v209 = vlaneseq
      %v210 = vshrl.u32 %v209, 7
      %v211 = vsub.s32 0, %v210
      %v212 = vrot.slane %v207, %v211
      %vm214 = vcmask 64512
      %v216 = vsel %vm214, %v198, 0
      %v219 = vsel %vm214, %v199, 0
      %v222 = vsel %vm214, %v200, 0
      %v225 = vsel %vm214, %v201, 0
      %v228 = vsel %vm214, %v202, 0
      %v231 = vsel %vm214, %v203, 0
      %v234 = vsel %vm214, %v204, 0
      %v237 = vsel %vm214, %v205, 0
      %239 = vmatprep.subr.mxu0 0.0
      %240 = vmatpush1.msra.mxu0 0.0
      %241 = vmatprep.subr.mxu0 0.0
      %242 = vmatpush1.msra.mxu0 0.0
      %243 = vmatprep.subr.mxu0 0.0
      %244 = vmatpush1.msra.mxu0 0.0
      %245 = vmatprep.subr.mxu0 0.0
      %246 = vmatpush1.msra.mxu0 0.0
      %247 = vmatprep.subr.mxu0 0.0
      %248 = vmatpush1.msra.mxu0 0.0
      %249 = vmatprep.subr.mxu0 0.0
      %250 = vmatpush1.msra.mxu0 0.0
      %251 = vmatprep.subr.mxu0 0.0
      %252 = vmatpush1.msra.mxu0 0.0
      %253 = vmatprep.subr.mxu0 0.0
      %254 = vmatpush1.msra.mxu0 0.0
      %255 = vmatprep.subr.mxu0 0.0
      %256 = vmatpush1.msra.mxu0 0.0
      %257 = vmatprep.subr.mxu0 0.0
      %258 = vmatpush1.msra.mxu0 0.0
      %259 = vmatprep.subr.mxu0 0.0
      %260 = vmatpush1.msra.mxu0 0.0
      %261 = vmatprep.subr.mxu0 0.0
      %262 = vmatpush1.msra.mxu0 0.0
      %263 = vmatprep.subr.mxu0 0.0
      %264 = vmatpush1.msra.mxu0 0.0
      %265 = vmatprep.subr.mxu0 0.0
      %266 = vmatpush1.msra.mxu0 0.0
      %267 = vmatprep.subr.mxu0 0.0
      %268 = vmatpush1.msra.mxu0 0.0
      %269 = vmatprep.subr.mxu0 0.0
      %270 = vmatpush1.msra.mxu0 %v206
      %271 = vmatprep.subr.mxu0 0.0
      %272 = vmatpush2.msra.mxu0 0.0
      %273 = vmatprep.subr.mxu0 0.0
      %274 = vmatpush2.msra.mxu0 0.0
      %275 = vmatprep.subr.mxu0 0.0
      %276 = vmatpush2.msra.mxu0 0.0
      %277 = vmatprep.subr.mxu0 0.0
      %278 = vmatpush2.msra.mxu0 0.0
      %279 = vmatprep.subr.mxu0 0.0
      %280 = vmatpush2.msra.mxu0 0.0
      %281 = vmatprep.subr.mxu0 0.0
      %282 = vmatpush2.msra.mxu0 0.0
      %283 = vmatprep.subr.mxu0 0.0
      %284 = vmatpush2.msra.mxu0 0.0
      %285 = vmatprep.subr.mxu0 0.0
      %286 = vmatpush2.msra.mxu0 0.0
      %287 = vmatprep.subr.mxu0 0.0
      %288 = vmatpush2.msra.mxu0 0.0
      %289 = vmatprep.subr.mxu0 0.0
      %290 = vmatpush2.msra.mxu0 0.0
      %291 = vmatprep.subr.mxu0 0.0
      %292 = vmatpush2.msra.mxu0 0.0
      %293 = vmatprep.subr.mxu0 0.0
      %294 = vmatpush2.msra.mxu0 0.0
      %295 = vmatprep.subr.mxu0 0.0
      %296 = vmatpush2.msra.mxu0 0.0
      %297 = vmatprep.subr.mxu0 0.0
      %298 = vmatpush2.msra.mxu0 0.0
      %299 = vmatprep.subr.mxu0 0.0
      %300 = vmatpush2.msra.mxu0 0.0
      %301 = vmatprep.subr.mxu0 0.0
      %302 = vmatpush2.msra.mxu0 0.0
      %303 = vmatprep.mubr.f32.mxu0 0.0
      %304 = vmatmul.mubr.f32.gmra.mxu0 %v216
      %v305 = vpop.f32.mrf.mxu0
      %v306 = vadd.f32 %v212, %v305
      %v307 = vpop.f32.mrf.mxu0
      %308 = vmatprep.mubr.f32.mxu0 0.0
      %309 = vmatmul.mubr.f32.gmra.mxu0 %v219
      %v310 = vpop.f32.mrf.mxu0
      %v311 = vadd.f32 %v212, %v310
      %v312 = vpop.f32.mrf.mxu0
      %313 = vmatprep.mubr.f32.mxu0 0.0
      %314 = vmatmul.mubr.f32.gmra.mxu0 %v222
      %v315 = vpop.f32.mrf.mxu0
      %v316 = vadd.f32 %v212, %v315
      %v317 = vpop.f32.mrf.mxu0
      %318 = vmatprep.mubr.f32.mxu0 0.0
      %319 = vmatmul.mubr.f32.gmra.mxu0 %v225
      %v320 = vpop.f32.mrf.mxu0
      %v321 = vadd.f32 %v212, %v320
      %v322 = vpop.f32.mrf.mxu0
      %323 = vmatprep.mubr.f32.mxu0 0.0
      %324 = vmatmul.mubr.f32.gmra.mxu0 %v228
      %v325 = vpop.f32.mrf.mxu0
      %v326 = vadd.f32 %v212, %v325
      %v327 = vpop.f32.mrf.mxu0
      %328 = vmatprep.mubr.f32.mxu0 0.0
      %329 = vmatmul.mubr.f32.gmra.mxu0 %v231
      %v330 = vpop.f32.mrf.mxu0
      %v331 = vadd.f32 %v212, %v330
      %v332 = vpop.f32.mrf.mxu0
      %333 = vmatprep.mubr.f32.mxu0 0.0
      %334 = vmatmul.mubr.f32.gmra.mxu0 %v234
      %v335 = vpop.f32.mrf.mxu0
      %v336 = vadd.f32 %v212, %v335
      %v337 = vpop.f32.mrf.mxu0
      %338 = vmatprep.mubr.f32.mxu0 0.0
      %339 = vmatmul.mubr.f32.gmra.mxu0 %v237
      %v340 = vpop.f32.mrf.mxu0
      %v341 = vadd.f32 %v212, %v340
      %v342 = vpop.f32.mrf.mxu0
      %343 = vdwg.mxu0
      %344 = vst.msk [vmem:[#allocation2] sm:$0xff] %vm214, 0.0
      %345 = vst.msk [vmem:[#allocation2 + $0x8] sm:$0xff] %vm214, 0.0
      %vm346 = vcmask 58368
      %347 = vst.msk [vmem:[#allocation2 + $0x10] sm:$0x3] %vm346, 0.0
      %348 = vst.msk [vmem:[#allocation2 + $0x18] sm:$0xff] %vm214, 0.0
      %349 = vst.msk [vmem:[#allocation2 + $0x20] sm:$0xff] %vm214, 0.0
      %350 = vst.msk [vmem:[#allocation2 + $0x28] sm:$0x3] %vm346, 0.0
      %351 = vst.msk [vmem:[#allocation2 + $0x30] sm:$0xff] %vm214, 0.0
      %352 = vst.msk [vmem:[#allocation2 + $0x38] sm:$0xff] %vm214, 0.0
      %353 = vst.msk [vmem:[#allocation2 + $0x40] sm:$0x3] %vm346, 0.0
      %354 = vst.msk [vmem:[#allocation2 + $0x48] sm:$0xff] %vm214, 0.0
      %355 = vst.msk [vmem:[#allocation2 + $0x50] sm:$0xff] %vm214, 0.0
      %356 = vst.msk [vmem:[#allocation2 + $0x58] sm:$0x3] %vm346, 0.0
      %357 = vst.msk [vmem:[#allocation2 + $0x60] sm:$0xff] %vm214, 0.0
      %358 = vst.msk [vmem:[#allocation2 + $0x68] sm:$0xff] %vm214, 0.0
      %359 = vst.msk [vmem:[#allocation2 + $0x70] sm:$0x3] %vm346, 0.0
      %360 = vst.msk [vmem:[#allocation2 + $0x78] sm:$0xff] %vm214, 0.0
      %361 = vst.msk [vmem:[#allocation2 + $0x80] sm:$0xff] %vm214, 0.0
      %362 = vst.msk [vmem:[#allocation2 + $0x88] sm:$0x3] %vm346, 0.0
      %363 = vxpose.xlu0.b32.start [1/16] %v306, 128
      %364 = vxpose.xlu0.b32.cont [2/16] %v311, 128
      %365 = vxpose.xlu0.b32.cont [3/16] 0.0, 128
      %366 = vxpose.xlu0.b32.cont [4/16] 0.0, 128
      %367 = vxpose.xlu0.b32.cont [5/16] 0.0, 128
      %368 = vxpose.xlu0.b32.cont [6/16] 0.0, 128
      %369 = vxpose.xlu0.b32.cont [7/16] 0.0, 128
      %370 = vxpose.xlu0.b32.cont [8/16] 0.0, 128
      %371 = vxpose.xlu0.b32.cont [9/16] 0.0, 128
      %372 = vxpose.xlu0.b32.cont [10/16] 0.0, 128
      %373 = vxpose.xlu0.b32.cont [11/16] 0.0, 128
      %374 = vxpose.xlu0.b32.cont [12/16] 0.0, 128
      %375 = vxpose.xlu0.b32.cont [13/16] 0.0, 128
      %376 = vxpose.xlu0.b32.cont [14/16] 0.0, 128
      %377 = vxpose.xlu0.b32.cont [15/16] 0.0, 128
      %378 = vxpose.xlu0.b32.end [16/16] 0.0, 128
      %v379 = vpop.trf.xlu0
      %v380 = vpop.trf.xlu0
      %v381 = vpop.trf.xlu0
      %v382 = vpop.trf.xlu0
      %v383 = vpop.trf.xlu0
      %v384 = vpop.trf.xlu0
      %v385 = vpop.trf.xlu0
      %v386 = vpop.trf.xlu0
      %v387 = vpop.trf.xlu0
      %v388 = vpop.trf.xlu0
      %v389 = vpop.trf.xlu0
      %v390 = vpop.trf.xlu0
      %v391 = vpop.trf.xlu0
      %v392 = vpop.trf.xlu0
      %v393 = vpop.trf.xlu0
      %v394 = vpop.trf.xlu0
      %397 = vrot.lane.b32.xlu0 %v306, 120
      %v398 = vpop.permute.xlu0 %397
      %399 = vrot.lane.b32.xlu0 %v311, 120
      %v400 = vpop.permute.xlu0 %399
      %vm403 = vcmask 130048
      %v405 = vsel %vm403, %v379, 0
      %407 = vmatprep.subr.mxu0 0.0
      %408 = vmatpush1.msra.mxu0 0.0
      %409 = vmatprep.subr.mxu0 0.0
      %410 = vmatpush1.msra.mxu0 0.0
      %411 = vmatprep.subr.mxu0 0.0
      %412 = vmatpush1.msra.mxu0 0.0
      %413 = vmatprep.subr.mxu0 0.0
      %414 = vmatpush1.msra.mxu0 0.0
      %415 = vmatprep.subr.mxu0 0.0
      %416 = vmatpush1.msra.mxu0 0.0
      %417 = vmatprep.subr.mxu0 0.0
      %418 = vmatpush1.msra.mxu0 0.0
      %419 = vmatprep.subr.mxu0 0.0
      %420 = vmatpush1.msra.mxu0 0.0
      %421 = vmatprep.subr.mxu0 0.0
      %422 = vmatpush1.msra.mxu0 0.0
      %423 = vmatprep.subr.mxu0 0.0
      %424 = vmatpush1.msra.mxu0 0.0
      %425 = vmatprep.subr.mxu0 0.0
      %426 = vmatpush1.msra.mxu0 0.0
      %427 = vmatprep.subr.mxu0 0.0
      %428 = vmatpush1.msra.mxu0 0.0
      %429 = vmatprep.subr.mxu0 0.0
      %430 = vmatpush1.msra.mxu0 0.0
      %431 = vmatprep.subr.mxu0 0.0
      %432 = vmatpush1.msra.mxu0 0.0
      %433 = vmatprep.subr.mxu0 0.0
      %434 = vmatpush1.msra.mxu0 0.0
      %435 = vmatprep.subr.mxu0 0.0
      %436 = vmatpush1.msra.mxu0 %v400
      %437 = vmatprep.subr.mxu0 0.0
      %438 = vmatpush1.msra.mxu0 %v398
      %439 = vmatprep.subr.mxu0 0.0
      %440 = vmatpush2.msra.mxu0 0.0
      %441 = vmatprep.subr.mxu0 0.0
      %442 = vmatpush2.msra.mxu0 0.0
      %443 = vmatprep.subr.mxu0 0.0
      %444 = vmatpush2.msra.mxu0 0.0
      %445 = vmatprep.subr.mxu0 0.0
      %446 = vmatpush2.msra.mxu0 0.0
      %447 = vmatprep.subr.mxu0 0.0
      %448 = vmatpush2.msra.mxu0 0.0
      %449 = vmatprep.subr.mxu0 0.0
      %450 = vmatpush2.msra.mxu0 0.0
      %451 = vmatprep.subr.mxu0 0.0
      %452 = vmatpush2.msra.mxu0 0.0
      %453 = vmatprep.subr.mxu0 0.0
      %454 = vmatpush2.msra.mxu0 0.0
      %455 = vmatprep.subr.mxu0 0.0
      %456 = vmatpush2.msra.mxu0 0.0
      %457 = vmatprep.subr.mxu0 0.0
      %458 = vmatpush2.msra.mxu0 0.0
      %459 = vmatprep.subr.mxu0 0.0
      %460 = vmatpush2.msra.mxu0 0.0
      %461 = vmatprep.subr.mxu0 0.0
      %462 = vmatpush2.msra.mxu0 0.0
      %463 = vmatprep.subr.mxu0 0.0
      %464 = vmatpush2.msra.mxu0 0.0
      %465 = vmatprep.subr.mxu0 0.0
      %466 = vmatpush2.msra.mxu0 0.0
      %467 = vmatprep.subr.mxu0 0.0
      %468 = vmatpush2.msra.mxu0 0.0
      %469 = vmatprep.subr.mxu0 0.0
      %470 = vmatpush2.msra.mxu0 0.0
      %471 = vmatprep.mubr.f32.mxu0 0.0
      %472 = vmatmul.mubr.f32.gmra.mxu0 %v405
      %v473 = vpop.f32.mrf.mxu0
      %v474 = vadd.f32 0.0, %v473
      %v475 = vpop.f32.mrf.mxu0
      %476 = vdwg.mxu0
      %v477 = vsel %vm214, %v474, -inf
      %478 = vmax.xlane.f32.xlu0 %v477
      %v479 = vpop.xlane.xlu0 %478
      %v480 = vsub.f32 %v474, %v479
      %v481 = vmul.f32 %v480, 1.442695
      %v482 = vpow.pop %v481
      %v483 = vsel %vm214, %v482, 0.0
      %484 = vadd.xlane.f32.xlu0 %v483
      %v485 = vpop.xlane.xlu0 %484
      %v486 = vrcp.pop %v485
      %v487 = vmul.f32 %v482, %v486
      %488 = vrot.lane.b32.xlu0 %v306, 112
      %v489 = vpop.permute.xlu0 %488
      %490 = vrot.lane.b32.xlu0 %v311, 112
      %v491 = vpop.permute.xlu0 %490
      %v492 = vsel %vm214, %v489, 0
      %v494 = vsel %vm214, %v491, 0
      %v497 = vsel %vm214, %v487, 0
      %499 = vmatprep.subr.mxu0 0.0
      %500 = vmatpush1.xpose.msra.mxu0 0.0
      %501 = vmatprep.subr.mxu0 0.0
      %502 = vmatpush1.xpose.msra.mxu0 0.0
      %503 = vmatprep.subr.mxu0 0.0
      %504 = vmatpush1.xpose.msra.mxu0 0.0
      %505 = vmatprep.subr.mxu0 0.0
      %506 = vmatpush1.xpose.msra.mxu0 0.0
      %507 = vmatprep.subr.mxu0 0.0
      %508 = vmatpush1.xpose.msra.mxu0 0.0
      %509 = vmatprep.subr.mxu0 0.0
      %510 = vmatpush1.xpose.msra.mxu0 0.0
      %511 = vmatprep.subr.mxu0 0.0
      %512 = vmatpush1.xpose.msra.mxu0 0.0
      %513 = vmatprep.subr.mxu0 0.0
      %514 = vmatpush1.xpose.msra.mxu0 0.0
      %515 = vmatprep.subr.mxu0 0.0
      %516 = vmatpush1.xpose.msra.mxu0 0.0
      %517 = vmatprep.subr.mxu0 0.0
      %518 = vmatpush1.xpose.msra.mxu0 0.0
      %519 = vmatprep.subr.mxu0 0.0
      %520 = vmatpush1.xpose.msra.mxu0 0.0
      %521 = vmatprep.subr.mxu0 0.0
      %522 = vmatpush1.xpose.msra.mxu0 0.0
      %523 = vmatprep.subr.mxu0 0.0
      %524 = vmatpush1.xpose.msra.mxu0 0.0
      %525 = vmatprep.subr.mxu0 0.0
      %526 = vmatpush1.xpose.msra.mxu0 0.0
      %527 = vmatprep.subr.mxu0 0.0
      %528 = vmatpush1.xpose.msra.mxu0 0.0
      %529 = vmatprep.subr.mxu0 0.0
      %530 = vmatpush1.xpose.msra.mxu0 %v497
      %531 = vmatprep.subr.mxu0 0.0
      %532 = vmatpush2.xpose.msra.mxu0 0.0
      %533 = vmatprep.subr.mxu0 0.0
      %534 = vmatpush2.xpose.msra.mxu0 0.0
      %535 = vmatprep.subr.mxu0 0.0
      %536 = vmatpush2.xpose.msra.mxu0 0.0
      %537 = vmatprep.subr.mxu0 0.0
      %538 = vmatpush2.xpose.msra.mxu0 0.0
      %539 = vmatprep.subr.mxu0 0.0
      %540 = vmatpush2.xpose.msra.mxu0 0.0
      %541 = vmatprep.subr.mxu0 0.0
      %542 = vmatpush2.xpose.msra.mxu0 0.0
      %543 = vmatprep.subr.mxu0 0.0
      %544 = vmatpush2.xpose.msra.mxu0 0.0
      %545 = vmatprep.subr.mxu0 0.0
      %546 = vmatpush2.xpose.msra.mxu0 0.0
      %547 = vmatprep.subr.mxu0 0.0
      %548 = vmatpush2.xpose.msra.mxu0 0.0
      %549 = vmatprep.subr.mxu0 0.0
      %550 = vmatpush2.xpose.msra.mxu0 0.0
      %551 = vmatprep.subr.mxu0 0.0
      %552 = vmatpush2.xpose.msra.mxu0 0.0
      %553 = vmatprep.subr.mxu0 0.0
      %554 = vmatpush2.xpose.msra.mxu0 0.0
      %555 = vmatprep.subr.mxu0 0.0
      %556 = vmatpush2.xpose.msra.mxu0 0.0
      %557 = vmatprep.subr.mxu0 0.0
      %558 = vmatpush2.xpose.msra.mxu0 0.0
      %559 = vmatprep.subr.mxu0 0.0
      %560 = vmatpush2.xpose.msra.mxu0 0.0
      %561 = vmatprep.subr.mxu0 0.0
      %562 = vmatpush2.xpose.msra.mxu0 0.0
      %563 = vmatprep.mubr.f32.mxu0 0.0
      %564 = vmatmul.mubr.f32.gmra.mxu0 %v492
      %v565 = vpop.f32.mrf.mxu0
      %v566 = vadd.f32 0.0, %v565
      %v567 = vpop.f32.mrf.mxu0
      %568 = vmatprep.mubr.f32.mxu0 0.0
      %569 = vmatmul.mubr.f32.gmra.mxu0 %v494
      %v570 = vpop.f32.mrf.mxu0
      %v571 = vadd.f32 0.0, %v570
      %v572 = vpop.f32.mrf.mxu0
      %573 = vdwg.mxu0
      %s574 = scalar_lea.vmem [#allocation2], 24
      %575 = vst.msk [vmem:[%s574 + $0x1] sm:$0xff] %vm214, %v566
      %576 = vst.msk [vmem:[%s574 + $0x9] sm:$0xff] %vm214, %v571
      %577 = vxpose.xlu0.b32.start [1/16] %v316, 128
      %578 = vxpose.xlu0.b32.cont [2/16] %v321, 128
      %579 = vxpose.xlu0.b32.cont [3/16] 0.0, 128
      %580 = vxpose.xlu0.b32.cont [4/16] 0.0, 128
      %581 = vxpose.xlu0.b32.cont [5/16] 0.0, 128
      %582 = vxpose.xlu0.b32.cont [6/16] 0.0, 128
      %583 = vxpose.xlu0.b32.cont [7/16] 0.0, 128
      %584 = vxpose.xlu0.b32.cont [8/16] 0.0, 128
      %585 = vxpose.xlu0.b32.cont [9/16] 0.0, 128
      %586 = vxpose.xlu0.b32.cont [10/16] 0.0, 128
      %587 = vxpose.xlu0.b32.cont [11/16] 0.0, 128
      %588 = vxpose.xlu0.b32.cont [12/16] 0.0, 128
      %589 = vxpose.xlu0.b32.cont [13/16] 0.0, 128
      %590 = vxpose.xlu0.b32.cont [14/16] 0.0, 128
      %591 = vxpose.xlu0.b32.cont [15/16] 0.0, 128
      %592 = vxpose.xlu0.b32.end [16/16] 0.0, 128
      %v593 = vpop.trf.xlu0
      %v594 = vpop.trf.xlu0
      %v595 = vpop.trf.xlu0
      %v596 = vpop.trf.xlu0
      %v597 = vpop.trf.xlu0
      %v598 = vpop.trf.xlu0
      %v599 = vpop.trf.xlu0
      %v600 = vpop.trf.xlu0
      %v601 = vpop.trf.xlu0
      %v602 = vpop.trf.xlu0
      %v603 = vpop.trf.xlu0
      %v604 = vpop.trf.xlu0
      %v605 = vpop.trf.xlu0
      %v606 = vpop.trf.xlu0
      %v607 = vpop.trf.xlu0
      %v608 = vpop.trf.xlu0
      %611 = vrot.lane.b32.xlu0 %v316, 120
      %v612 = vpop.permute.xlu0 %611
      %613 = vrot.lane.b32.xlu0 %v321, 120
      %v614 = vpop.permute.xlu0 %613
      %v618 = vsel %vm403, %v593, 0
      %620 = vmatprep.subr.mxu0 0.0
      %621 = vmatpush1.msra.mxu0 0.0
      %622 = vmatprep.subr.mxu0 0.0
      %623 = vmatpush1.msra.mxu0 0.0
      %624 = vmatprep.subr.mxu0 0.0
      %625 = vmatpush1.msra.mxu0 0.0
      %626 = vmatprep.subr.mxu0 0.0
      %627 = vmatpush1.msra.mxu0 0.0
      %628 = vmatprep.subr.mxu0 0.0
      %629 = vmatpush1.msra.mxu0 0.0
      %630 = vmatprep.subr.mxu0 0.0
      %631 = vmatpush1.msra.mxu0 0.0
      %632 = vmatprep.subr.mxu0 0.0
      %633 = vmatpush1.msra.mxu0 0.0
      %634 = vmatprep.subr.mxu0 0.0
      %635 = vmatpush1.msra.mxu0 0.0
      %636 = vmatprep.subr.mxu0 0.0
      %637 = vmatpush1.msra.mxu0 0.0
      %638 = vmatprep.subr.mxu0 0.0
      %639 = vmatpush1.msra.mxu0 0.0
      %640 = vmatprep.subr.mxu0 0.0
      %641 = vmatpush1.msra.mxu0 0.0
      %642 = vmatprep.subr.mxu0 0.0
      %643 = vmatpush1.msra.mxu0 0.0
      %644 = vmatprep.subr.mxu0 0.0
      %645 = vmatpush1.msra.mxu0 0.0
      %646 = vmatprep.subr.mxu0 0.0
      %647 = vmatpush1.msra.mxu0 0.0
      %648 = vmatprep.subr.mxu0 0.0
      %649 = vmatpush1.msra.mxu0 %v614
      %650 = vmatprep.subr.mxu0 0.0
      %651 = vmatpush1.msra.mxu0 %v612
      %652 = vmatprep.subr.mxu0 0.0
      %653 = vmatpush2.msra.mxu0 0.0
      %654 = vmatprep.subr.mxu0 0.0
      %655 = vmatpush2.msra.mxu0 0.0
      %656 = vmatprep.subr.mxu0 0.0
      %657 = vmatpush2.msra.mxu0 0.0
      %658 = vmatprep.subr.mxu0 0.0
      %659 = vmatpush2.msra.mxu0 0.0
      %660 = vmatprep.subr.mxu0 0.0
      %661 = vmatpush2.msra.mxu0 0.0
      %662 = vmatprep.subr.mxu0 0.0
      %663 = vmatpush2.msra.mxu0 0.0
      %664 = vmatprep.subr.mxu0 0.0
      %665 = vmatpush2.msra.mxu0 0.0
      %666 = vmatprep.subr.mxu0 0.0
      %667 = vmatpush2.msra.mxu0 0.0
      %668 = vmatprep.subr.mxu0 0.0
      %669 = vmatpush2.msra.mxu0 0.0
      %670 = vmatprep.subr.mxu0 0.0
      %671 = vmatpush2.msra.mxu0 0.0
      %672 = vmatprep.subr.mxu0 0.0
      %673 = vmatpush2.msra.mxu0 0.0
      %674 = vmatprep.subr.mxu0 0.0
      %675 = vmatpush2.msra.mxu0 0.0
      %676 = vmatprep.subr.mxu0 0.0
      %677 = vmatpush2.msra.mxu0 0.0
      %678 = vmatprep.subr.mxu0 0.0
      %679 = vmatpush2.msra.mxu0 0.0
      %680 = vmatprep.subr.mxu0 0.0
      %681 = vmatpush2.msra.mxu0 0.0
      %682 = vmatprep.subr.mxu0 0.0
      %683 = vmatpush2.msra.mxu0 0.0
      %684 = vmatprep.mubr.f32.mxu0 0.0
      %685 = vmatmul.mubr.f32.gmra.mxu0 %v618
      %v686 = vpop.f32.mrf.mxu0
      %v687 = vadd.f32 0.0, %v686
      %v688 = vpop.f32.mrf.mxu0
      %689 = vdwg.mxu0
      %v690 = vsel %vm214, %v687, -inf
      %691 = vmax.xlane.f32.xlu0 %v690
      %v692 = vpop.xlane.xlu0 %691
      %v693 = vsub.f32 %v687, %v692
      %v694 = vmul.f32 %v693, 1.442695
      %v695 = vpow.pop %v694
      %v696 = vsel %vm214, %v695, 0.0
      %697 = vadd.xlane.f32.xlu0 %v696
      %v698 = vpop.xlane.xlu0 %697
      %v699 = vrcp.pop %v698
      %v700 = vmul.f32 %v695, %v699
      %701 = vrot.lane.b32.xlu0 %v316, 112
      %v702 = vpop.permute.xlu0 %701
      %703 = vrot.lane.b32.xlu0 %v321, 112
      %v704 = vpop.permute.xlu0 %703
      %v705 = vsel %vm214, %v702, 0
      %v707 = vsel %vm214, %v704, 0
      %v710 = vsel %vm214, %v700, 0
      %712 = vmatprep.subr.mxu0 0.0
      %713 = vmatpush1.xpose.msra.mxu0 0.0
      %714 = vmatprep.subr.mxu0 0.0
      %715 = vmatpush1.xpose.msra.mxu0 0.0
      %716 = vmatprep.subr.mxu0 0.0
      %717 = vmatpush1.xpose.msra.mxu0 0.0
      %718 = vmatprep.subr.mxu0 0.0
      %719 = vmatpush1.xpose.msra.mxu0 0.0
      %720 = vmatprep.subr.mxu0 0.0
      %721 = vmatpush1.xpose.msra.mxu0 0.0
      %722 = vmatprep.subr.mxu0 0.0
      %723 = vmatpush1.xpose.msra.mxu0 0.0
      %724 = vmatprep.subr.mxu0 0.0
      %725 = vmatpush1.xpose.msra.mxu0 0.0
      %726 = vmatprep.subr.mxu0 0.0
      %727 = vmatpush1.xpose.msra.mxu0 0.0
      %728 = vmatprep.subr.mxu0 0.0
      %729 = vmatpush1.xpose.msra.mxu0 0.0
      %730 = vmatprep.subr.mxu0 0.0
      %731 = vmatpush1.xpose.msra.mxu0 0.0
      %732 = vmatprep.subr.mxu0 0.0
      %733 = vmatpush1.xpose.msra.mxu0 0.0
      %734 = vmatprep.subr.mxu0 0.0
      %735 = vmatpush1.xpose.msra.mxu0 0.0
      %736 = vmatprep.subr.mxu0 0.0
      %737 = vmatpush1.xpose.msra.mxu0 0.0
      %738 = vmatprep.subr.mxu0 0.0
      %739 = vmatpush1.xpose.msra.mxu0 0.0
      %740 = vmatprep.subr.mxu0 0.0
      %741 = vmatpush1.xpose.msra.mxu0 0.0
      %742 = vmatprep.subr.mxu0 0.0
      %743 = vmatpush1.xpose.msra.mxu0 %v710
      %744 = vmatprep.subr.mxu0 0.0
      %745 = vmatpush2.xpose.msra.mxu0 0.0
      %746 = vmatprep.subr.mxu0 0.0
      %747 = vmatpush2.xpose.msra.mxu0 0.0
      %748 = vmatprep.subr.mxu0 0.0
      %749 = vmatpush2.xpose.msra.mxu0 0.0
      %750 = vmatprep.subr.mxu0 0.0
      %751 = vmatpush2.xpose.msra.mxu0 0.0
      %752 = vmatprep.subr.mxu0 0.0
      %753 = vmatpush2.xpose.msra.mxu0 0.0
      %754 = vmatprep.subr.mxu0 0.0
      %755 = vmatpush2.xpose.msra.mxu0 0.0
      %756 = vmatprep.subr.mxu0 0.0
      %757 = vmatpush2.xpose.msra.mxu0 0.0
      %758 = vmatprep.subr.mxu0 0.0
      %759 = vmatpush2.xpose.msra.mxu0 0.0
      %760 = vmatprep.subr.mxu0 0.0
      %761 = vmatpush2.xpose.msra.mxu0 0.0
      %762 = vmatprep.subr.mxu0 0.0
      %763 = vmatpush2.xpose.msra.mxu0 0.0
      %764 = vmatprep.subr.mxu0 0.0
      %765 = vmatpush2.xpose.msra.mxu0 0.0
      %766 = vmatprep.subr.mxu0 0.0
      %767 = vmatpush2.xpose.msra.mxu0 0.0
      %768 = vmatprep.subr.mxu0 0.0
      %769 = vmatpush2.xpose.msra.mxu0 0.0
      %770 = vmatprep.subr.mxu0 0.0
      %771 = vmatpush2.xpose.msra.mxu0 0.0
      %772 = vmatprep.subr.mxu0 0.0
      %773 = vmatpush2.xpose.msra.mxu0 0.0
      %774 = vmatprep.subr.mxu0 0.0
      %775 = vmatpush2.xpose.msra.mxu0 0.0
      %776 = vmatprep.mubr.f32.mxu0 0.0
      %777 = vmatmul.mubr.f32.gmra.mxu0 %v705
      %v778 = vpop.f32.mrf.mxu0
      %v779 = vadd.f32 0.0, %v778
      %v780 = vpop.f32.mrf.mxu0
      %781 = vmatprep.mubr.f32.mxu0 0.0
      %782 = vmatmul.mubr.f32.gmra.mxu0 %v707
      %v783 = vpop.f32.mrf.mxu0
      %v784 = vadd.f32 0.0, %v783
      %v785 = vpop.f32.mrf.mxu0
      %786 = vdwg.mxu0
      %s787 = scalar_lea.vmem [#allocation2], 48
      %788 = vst.msk [vmem:[%s787 + $0x1] sm:$0xff] %vm214, %v779
      %789 = vst.msk [vmem:[%s787 + $0x9] sm:$0xff] %vm214, %v784
      %790 = vxpose.xlu0.b32.start [1/16] %v326, 128
      %791 = vxpose.xlu0.b32.cont [2/16] %v331, 128
      %792 = vxpose.xlu0.b32.cont [3/16] 0.0, 128
      %793 = vxpose.xlu0.b32.cont [4/16] 0.0, 128
      %794 = vxpose.xlu0.b32.cont [5/16] 0.0, 128
      %795 = vxpose.xlu0.b32.cont [6/16] 0.0, 128
      %796 = vxpose.xlu0.b32.cont [7/16] 0.0, 128
      %797 = vxpose.xlu0.b32.cont [8/16] 0.0, 128
      %798 = vxpose.xlu0.b32.cont [9/16] 0.0, 128
      %799 = vxpose.xlu0.b32.cont [10/16] 0.0, 128
      %800 = vxpose.xlu0.b32.cont [11/16] 0.0, 128
      %801 = vxpose.xlu0.b32.cont [12/16] 0.0, 128
      %802 = vxpose.xlu0.b32.cont [13/16] 0.0, 128
      %803 = vxpose.xlu0.b32.cont [14/16] 0.0, 128
      %804 = vxpose.xlu0.b32.cont [15/16] 0.0, 128
      %805 = vxpose.xlu0.b32.end [16/16] 0.0, 128
      %v806 = vpop.trf.xlu0
      %v807 = vpop.trf.xlu0
      %v808 = vpop.trf.xlu0
      %v809 = vpop.trf.xlu0
      %v810 = vpop.trf.xlu0
      %v811 = vpop.trf.xlu0
      %v812 = vpop.trf.xlu0
      %v813 = vpop.trf.xlu0
      %v814 = vpop.trf.xlu0
      %v815 = vpop.trf.xlu0
      %v816 = vpop.trf.xlu0
      %v817 = vpop.trf.xlu0
      %v818 = vpop.trf.xlu0
      %v819 = vpop.trf.xlu0
      %v820 = vpop.trf.xlu0
      %v821 = vpop.trf.xlu0
      %824 = vrot.lane.b32.xlu0 %v326, 120
      %v825 = vpop.permute.xlu0 %824
      %826 = vrot.lane.b32.xlu0 %v331, 120
      %v827 = vpop.permute.xlu0 %826
      %v831 = vsel %vm403, %v806, 0
      %833 = vmatprep.subr.mxu0 0.0
      %834 = vmatpush1.msra.mxu0 0.0
      %835 = vmatprep.subr.mxu0 0.0
      %836 = vmatpush1.msra.mxu0 0.0
      %837 = vmatprep.subr.mxu0 0.0
      %838 = vmatpush1.msra.mxu0 0.0
      %839 = vmatprep.subr.mxu0 0.0
      %840 = vmatpush1.msra.mxu0 0.0
      %841 = vmatprep.subr.mxu0 0.0
      %842 = vmatpush1.msra.mxu0 0.0
      %843 = vmatprep.subr.mxu0 0.0
      %844 = vmatpush1.msra.mxu0 0.0
      %845 = vmatprep.subr.mxu0 0.0
      %846 = vmatpush1.msra.mxu0 0.0
      %847 = vmatprep.subr.mxu0 0.0
      %848 = vmatpush1.msra.mxu0 0.0
      %849 = vmatprep.subr.mxu0 0.0
      %850 = vmatpush1.msra.mxu0 0.0
      %851 = vmatprep.subr.mxu0 0.0
      %852 = vmatpush1.msra.mxu0 0.0
      %853 = vmatprep.subr.mxu0 0.0
      %854 = vmatpush1.msra.mxu0 0.0
      %855 = vmatprep.subr.mxu0 0.0
      %856 = vmatpush1.msra.mxu0 0.0
      %857 = vmatprep.subr.mxu0 0.0
      %858 = vmatpush1.msra.mxu0 0.0
      %859 = vmatprep.subr.mxu0 0.0
      %860 = vmatpush1.msra.mxu0 0.0
      %861 = vmatprep.subr.mxu0 0.0
      %862 = vmatpush1.msra.mxu0 %v827
      %863 = vmatprep.subr.mxu0 0.0
      %864 = vmatpush1.msra.mxu0 %v825
      %865 = vmatprep.subr.mxu0 0.0
      %866 = vmatpush2.msra.mxu0 0.0
      %867 = vmatprep.subr.mxu0 0.0
      %868 = vmatpush2.msra.mxu0 0.0
      %869 = vmatprep.subr.mxu0 0.0
      %870 = vmatpush2.msra.mxu0 0.0
      %871 = vmatprep.subr.mxu0 0.0
      %872 = vmatpush2.msra.mxu0 0.0
      %873 = vmatprep.subr.mxu0 0.0
      %874 = vmatpush2.msra.mxu0 0.0
      %875 = vmatprep.subr.mxu0 0.0
      %876 = vmatpush2.msra.mxu0 0.0
      %877 = vmatprep.subr.mxu0 0.0
      %878 = vmatpush2.msra.mxu0 0.0
      %879 = vmatprep.subr.mxu0 0.0
      %880 = vmatpush2.msra.mxu0 0.0
      %881 = vmatprep.subr.mxu0 0.0
      %882 = vmatpush2.msra.mxu0 0.0
      %883 = vmatprep.subr.mxu0 0.0
      %884 = vmatpush2.msra.mxu0 0.0
      %885 = vmatprep.subr.mxu0 0.0
      %886 = vmatpush2.msra.mxu0 0.0
      %887 = vmatprep.subr.mxu0 0.0
      %888 = vmatpush2.msra.mxu0 0.0
      %889 = vmatprep.subr.mxu0 0.0
      %890 = vmatpush2.msra.mxu0 0.0
      %891 = vmatprep.subr.mxu0 0.0
      %892 = vmatpush2.msra.mxu0 0.0
      %893 = vmatprep.subr.mxu0 0.0
      %894 = vmatpush2.msra.mxu0 0.0
      %895 = vmatprep.subr.mxu0 0.0
      %896 = vmatpush2.msra.mxu0 0.0
      %897 = vmatprep.mubr.f32.mxu0 0.0
      %898 = vmatmul.mubr.f32.gmra.mxu0 %v831
      %v899 = vpop.f32.mrf.mxu0
      %v900 = vadd.f32 0.0, %v899
      %v901 = vpop.f32.mrf.mxu0
      %902 = vdwg.mxu0
      %v903 = vsel %vm214, %v900, -inf
      %904 = vmax.xlane.f32.xlu0 %v903
      %v905 = vpop.xlane.xlu0 %904
      %v906 = vsub.f32 %v900, %v905
      %v907 = vmul.f32 %v906, 1.442695
      %v908 = vpow.pop %v907
      %v909 = vsel %vm214, %v908, 0.0
      %910 = vadd.xlane.f32.xlu0 %v909
      %v911 = vpop.xlane.xlu0 %910
      %v912 = vrcp.pop %v911
      %v913 = vmul.f32 %v908, %v912
      %914 = vrot.lane.b32.xlu0 %v326, 112
      %v915 = vpop.permute.xlu0 %914
      %916 = vrot.lane.b32.xlu0 %v331, 112
      %v917 = vpop.permute.xlu0 %916
      %v918 = vsel %vm214, %v915, 0
      %v920 = vsel %vm214, %v917, 0
      %v923 = vsel %vm214, %v913, 0
      %925 = vmatprep.subr.mxu0 0.0
      %926 = vmatpush1.xpose.msra.mxu0 0.0
      %927 = vmatprep.subr.mxu0 0.0
      %928 = vmatpush1.xpose.msra.mxu0 0.0
      %929 = vmatprep.subr.mxu0 0.0
      %930 = vmatpush1.xpose.msra.mxu0 0.0
      %931 = vmatprep.subr.mxu0 0.0
      %932 = vmatpush1.xpose.msra.mxu0 0.0
      %933 = vmatprep.subr.mxu0 0.0
      %934 = vmatpush1.xpose.msra.mxu0 0.0
      %935 = vmatprep.subr.mxu0 0.0
      %936 = vmatpush1.xpose.msra.mxu0 0.0
      %937 = vmatprep.subr.mxu0 0.0
      %938 = vmatpush1.xpose.msra.mxu0 0.0
      %939 = vmatprep.subr.mxu0 0.0
      %940 = vmatpush1.xpose.msra.mxu0 0.0
      %941 = vmatprep.subr.mxu0 0.0
      %942 = vmatpush1.xpose.msra.mxu0 0.0
      %943 = vmatprep.subr.mxu0 0.0
      %944 = vmatpush1.xpose.msra.mxu0 0.0
      %945 = vmatprep.subr.mxu0 0.0
      %946 = vmatpush1.xpose.msra.mxu0 0.0
      %947 = vmatprep.subr.mxu0 0.0
      %948 = vmatpush1.xpose.msra.mxu0 0.0
      %949 = vmatprep.subr.mxu0 0.0
      %950 = vmatpush1.xpose.msra.mxu0 0.0
      %951 = vmatprep.subr.mxu0 0.0
      %952 = vmatpush1.xpose.msra.mxu0 0.0
      %953 = vmatprep.subr.mxu0 0.0
      %954 = vmatpush1.xpose.msra.mxu0 0.0
      %955 = vmatprep.subr.mxu0 0.0
      %956 = vmatpush1.xpose.msra.mxu0 %v923
      %957 = vmatprep.subr.mxu0 0.0
      %958 = vmatpush2.xpose.msra.mxu0 0.0
      %959 = vmatprep.subr.mxu0 0.0
      %960 = vmatpush2.xpose.msra.mxu0 0.0
      %961 = vmatprep.subr.mxu0 0.0
      %962 = vmatpush2.xpose.msra.mxu0 0.0
      %963 = vmatprep.subr.mxu0 0.0
      %964 = vmatpush2.xpose.msra.mxu0 0.0
      %965 = vmatprep.subr.mxu0 0.0
      %966 = vmatpush2.xpose.msra.mxu0 0.0
      %967 = vmatprep.subr.mxu0 0.0
      %968 = vmatpush2.xpose.msra.mxu0 0.0
      %969 = vmatprep.subr.mxu0 0.0
      %970 = vmatpush2.xpose.msra.mxu0 0.0
      %971 = vmatprep.subr.mxu0 0.0
      %972 = vmatpush2.xpose.msra.mxu0 0.0
      %973 = vmatprep.subr.mxu0 0.0
      %974 = vmatpush2.xpose.msra.mxu0 0.0
      %975 = vmatprep.subr.mxu0 0.0
      %976 = vmatpush2.xpose.msra.mxu0 0.0
      %977 = vmatprep.subr.mxu0 0.0
      %978 = vmatpush2.xpose.msra.mxu0 0.0
      %979 = vmatprep.subr.mxu0 0.0
      %980 = vmatpush2.xpose.msra.mxu0 0.0
      %981 = vmatprep.subr.mxu0 0.0
      %982 = vmatpush2.xpose.msra.mxu0 0.0
      %983 = vmatprep.subr.mxu0 0.0
      %984 = vmatpush2.xpose.msra.mxu0 0.0
      %985 = vmatprep.subr.mxu0 0.0
      %986 = vmatpush2.xpose.msra.mxu0 0.0
      %987 = vmatprep.subr.mxu0 0.0
      %988 = vmatpush2.xpose.msra.mxu0 0.0
      %989 = vmatprep.mubr.f32.mxu0 0.0
      %990 = vmatmul.mubr.f32.gmra.mxu0 %v918
      %v991 = vpop.f32.mrf.mxu0
      %v992 = vadd.f32 0.0, %v991
      %v993 = vpop.f32.mrf.mxu0
      %994 = vmatprep.mubr.f32.mxu0 0.0
      %995 = vmatmul.mubr.f32.gmra.mxu0 %v920
      %v996 = vpop.f32.mrf.mxu0
      %v997 = vadd.f32 0.0, %v996
      %v998 = vpop.f32.mrf.mxu0
      %999 = vdwg.mxu0
      %s1000 = scalar_lea.vmem [#allocation2], 72
      %1001 = vst.msk [vmem:[%s1000 + $0x1] sm:$0xff] %vm214, %v992
      %1002 = vst.msk [vmem:[%s1000 + $0x9] sm:$0xff] %vm214, %v997
      %1003 = vxpose.xlu0.b32.start [1/16] %v336, 128
      %1004 = vxpose.xlu0.b32.cont [2/16] %v341, 128
      %1005 = vxpose.xlu0.b32.cont [3/16] 0.0, 128
      %1006 = vxpose.xlu0.b32.cont [4/16] 0.0, 128
      %1007 = vxpose.xlu0.b32.cont [5/16] 0.0, 128
      %1008 = vxpose.xlu0.b32.cont [6/16] 0.0, 128
      %1009 = vxpose.xlu0.b32.cont [7/16] 0.0, 128
      %1010 = vxpose.xlu0.b32.cont [8/16] 0.0, 128
      %1011 = vxpose.xlu0.b32.cont [9/16] 0.0, 128
      %1012 = vxpose.xlu0.b32.cont [10/16] 0.0, 128
      %1013 = vxpose.xlu0.b32.cont [11/16] 0.0, 128
      %1014 = vxpose.xlu0.b32.cont [12/16] 0.0, 128
      %1015 = vxpose.xlu0.b32.cont [13/16] 0.0, 128
      %1016 = vxpose.xlu0.b32.cont [14/16] 0.0, 128
      %1017 = vxpose.xlu0.b32.cont [15/16] 0.0, 128
      %1018 = vxpose.xlu0.b32.end [16/16] 0.0, 128
      %v1019 = vpop.trf.xlu0
      %v1020 = vpop.trf.xlu0
      %v1021 = vpop.trf.xlu0
      %v1022 = vpop.trf.xlu0
      %v1023 = vpop.trf.xlu0
      %v1024 = vpop.trf.xlu0
      %v1025 = vpop.trf.xlu0
      %v1026 = vpop.trf.xlu0
      %v1027 = vpop.trf.xlu0
      %v1028 = vpop.trf.xlu0
      %v1029 = vpop.trf.xlu0
      %v1030 = vpop.trf.xlu0
      %v1031 = vpop.trf.xlu0
      %v1032 = vpop.trf.xlu0
      %v1033 = vpop.trf.xlu0
      %v1034 = vpop.trf.xlu0
      %1037 = vrot.lane.b32.xlu0 %v336, 120
      %v1038 = vpop.permute.xlu0 %1037
      %1039 = vrot.lane.b32.xlu0 %v341, 120
      %v1040 = vpop.permute.xlu0 %1039
      %v1044 = vsel %vm403, %v1019, 0
      %1046 = vmatprep.subr.mxu0 0.0
      %1047 = vmatpush1.msra.mxu0 0.0
      %1048 = vmatprep.subr.mxu0 0.0
      %1049 = vmatpush1.msra.mxu0 0.0
      %1050 = vmatprep.subr.mxu0 0.0
      %1051 = vmatpush1.msra.mxu0 0.0
      %1052 = vmatprep.subr.mxu0 0.0
      %1053 = vmatpush1.msra.mxu0 0.0
      %1054 = vmatprep.subr.mxu0 0.0
      %1055 = vmatpush1.msra.mxu0 0.0
      %1056 = vmatprep.subr.mxu0 0.0
      %1057 = vmatpush1.msra.mxu0 0.0
      %1058 = vmatprep.subr.mxu0 0.0
      %1059 = vmatpush1.msra.mxu0 0.0
      %1060 = vmatprep.subr.mxu0 0.0
      %1061 = vmatpush1.msra.mxu0 0.0
      %1062 = vmatprep.subr.mxu0 0.0
      %1063 = vmatpush1.msra.mxu0 0.0
      %1064 = vmatprep.subr.mxu0 0.0
      %1065 = vmatpush1.msra.mxu0 0.0
      %1066 = vmatprep.subr.mxu0 0.0
      %1067 = vmatpush1.msra.mxu0 0.0
      %1068 = vmatprep.subr.mxu0 0.0
      %1069 = vmatpush1.msra.mxu0 0.0
      %1070 = vmatprep.subr.mxu0 0.0
      %1071 = vmatpush1.msra.mxu0 0.0
      %1072 = vmatprep.subr.mxu0 0.0
      %1073 = vmatpush1.msra.mxu0 0.0
      %1074 = vmatprep.subr.mxu0 0.0
      %1075 = vmatpush1.msra.mxu0 %v1040
      %1076 = vmatprep.subr.mxu0 0.0
      %1077 = vmatpush1.msra.mxu0 %v1038
      %1078 = vmatprep.subr.mxu0 0.0
      %1079 = vmatpush2.msra.mxu0 0.0
      %1080 = vmatprep.subr.mxu0 0.0
      %1081 = vmatpush2.msra.mxu0 0.0
      %1082 = vmatprep.subr.mxu0 0.0
      %1083 = vmatpush2.msra.mxu0 0.0
      %1084 = vmatprep.subr.mxu0 0.0
      %1085 = vmatpush2.msra.mxu0 0.0
      %1086 = vmatprep.subr.mxu0 0.0
      %1087 = vmatpush2.msra.mxu0 0.0
      %1088 = vmatprep.subr.mxu0 0.0
      %1089 = vmatpush2.msra.mxu0 0.0
      %1090 = vmatprep.subr.mxu0 0.0
      %1091 = vmatpush2.msra.mxu0 0.0
      %1092 = vmatprep.subr.mxu0 0.0
      %1093 = vmatpush2.msra.mxu0 0.0
      %1094 = vmatprep.subr.mxu0 0.0
      %1095 = vmatpush2.msra.mxu0 0.0
      %1096 = vmatprep.subr.mxu0 0.0
      %1097 = vmatpush2.msra.mxu0 0.0
      %1098 = vmatprep.subr.mxu0 0.0
      %1099 = vmatpush2.msra.mxu0 0.0
      %1100 = vmatprep.subr.mxu0 0.0
      %1101 = vmatpush2.msra.mxu0 0.0
      %1102 = vmatprep.subr.mxu0 0.0
      %1103 = vmatpush2.msra.mxu0 0.0
      %1104 = vmatprep.subr.mxu0 0.0
      %1105 = vmatpush2.msra.mxu0 0.0
      %1106 = vmatprep.subr.mxu0 0.0
      %1107 = vmatpush2.msra.mxu0 0.0
      %1108 = vmatprep.subr.mxu0 0.0
      %1109 = vmatpush2.msra.mxu0 0.0
      %1110 = vmatprep.mubr.f32.mxu0 0.0
      %1111 = vmatmul.mubr.f32.gmra.mxu0 %v1044
      %v1112 = vpop.f32.mrf.mxu0
      %v1113 = vadd.f32 0.0, %v1112
      %v1114 = vpop.f32.mrf.mxu0
      %1115 = vdwg.mxu0
      %v1116 = vsel %vm214, %v1113, -inf
      %1117 = vmax.xlane.f32.xlu0 %v1116
      %v1118 = vpop.xlane.xlu0 %1117
      %v1119 = vsub.f32 %v1113, %v1118
      %v1120 = vmul.f32 %v1119, 1.442695
      %v1121 = vpow.pop %v1120
      %v1122 = vsel %vm214, %v1121, 0.0
      %1123 = vadd.xlane.f32.xlu0 %v1122
      %v1124 = vpop.xlane.xlu0 %1123
      %v1125 = vrcp.pop %v1124
      %v1126 = vmul.f32 %v1121, %v1125
      %1127 = vrot.lane.b32.xlu0 %v336, 112
      %v1128 = vpop.permute.xlu0 %1127
      %1129 = vrot.lane.b32.xlu0 %v341, 112
      %v1130 = vpop.permute.xlu0 %1129
      %v1131 = vsel %vm214, %v1128, 0
      %v1133 = vsel %vm214, %v1130, 0
      %v1136 = vsel %vm214, %v1126, 0
      %1138 = vmatprep.subr.mxu0 0.0
      %1139 = vmatpush1.xpose.msra.mxu0 0.0
      %1140 = vmatprep.subr.mxu0 0.0
      %1141 = vmatpush1.xpose.msra.mxu0 0.0
      %1142 = vmatprep.subr.mxu0 0.0
      %1143 = vmatpush1.xpose.msra.mxu0 0.0
      %1144 = vmatprep.subr.mxu0 0.0
      %1145 = vmatpush1.xpose.msra.mxu0 0.0
      %1146 = vmatprep.subr.mxu0 0.0
      %1147 = vmatpush1.xpose.msra.mxu0 0.0
      %1148 = vmatprep.subr.mxu0 0.0
      %1149 = vmatpush1.xpose.msra.mxu0 0.0
      %1150 = vmatprep.subr.mxu0 0.0
      %1151 = vmatpush1.xpose.msra.mxu0 0.0
      %1152 = vmatprep.subr.mxu0 0.0
      %1153 = vmatpush1.xpose.msra.mxu0 0.0
      %1154 = vmatprep.subr.mxu0 0.0
      %1155 = vmatpush1.xpose.msra.mxu0 0.0
      %1156 = vmatprep.subr.mxu0 0.0
      %1157 = vmatpush1.xpose.msra.mxu0 0.0
      %1158 = vmatprep.subr.mxu0 0.0
      %1159 = vmatpush1.xpose.msra.mxu0 0.0
      %1160 = vmatprep.subr.mxu0 0.0
      %1161 = vmatpush1.xpose.msra.mxu0 0.0
      %1162 = vmatprep.subr.mxu0 0.0
      %1163 = vmatpush1.xpose.msra.mxu0 0.0
      %1164 = vmatprep.subr.mxu0 0.0
      %1165 = vmatpush1.xpose.msra.mxu0 0.0
      %1166 = vmatprep.subr.mxu0 0.0
      %1167 = vmatpush1.xpose.msra.mxu0 0.0
      %1168 = vmatprep.subr.mxu0 0.0
      %1169 = vmatpush1.xpose.msra.mxu0 %v1136
      %1170 = vmatprep.subr.mxu0 0.0
      %1171 = vmatpush2.xpose.msra.mxu0 0.0
      %1172 = vmatprep.subr.mxu0 0.0
      %1173 = vmatpush2.xpose.msra.mxu0 0.0
      %1174 = vmatprep.subr.mxu0 0.0
      %1175 = vmatpush2.xpose.msra.mxu0 0.0
      %1176 = vmatprep.subr.mxu0 0.0
      %1177 = vmatpush2.xpose.msra.mxu0 0.0
      %1178 = vmatprep.subr.mxu0 0.0
      %1179 = vmatpush2.xpose.msra.mxu0 0.0
      %1180 = vmatprep.subr.mxu0 0.0
      %1181 = vmatpush2.xpose.msra.mxu0 0.0
      %1182 = vmatprep.subr.mxu0 0.0
      %1183 = vmatpush2.xpose.msra.mxu0 0.0
      %1184 = vmatprep.subr.mxu0 0.0
      %1185 = vmatpush2.xpose.msra.mxu0 0.0
      %1186 = vmatprep.subr.mxu0 0.0
      %1187 = vmatpush2.xpose.msra.mxu0 0.0
      %1188 = vmatprep.subr.mxu0 0.0
      %1189 = vmatpush2.xpose.msra.mxu0 0.0
      %1190 = vmatprep.subr.mxu0 0.0
      %1191 = vmatpush2.xpose.msra.mxu0 0.0
      %1192 = vmatprep.subr.mxu0 0.0
      %1193 = vmatpush2.xpose.msra.mxu0 0.0
      %1194 = vmatprep.subr.mxu0 0.0
      %1195 = vmatpush2.xpose.msra.mxu0 0.0
      %1196 = vmatprep.subr.mxu0 0.0
      %1197 = vmatpush2.xpose.msra.mxu0 0.0
      %1198 = vmatprep.subr.mxu0 0.0
      %1199 = vmatpush2.xpose.msra.mxu0 0.0
      %1200 = vmatprep.subr.mxu0 0.0
      %1201 = vmatpush2.xpose.msra.mxu0 0.0
      %1202 = vmatprep.mubr.f32.mxu0 0.0
      %1203 = vmatmul.mubr.f32.gmra.mxu0 %v1131
      %v1204 = vpop.f32.mrf.mxu0
      %v1205 = vadd.f32 0.0, %v1204
      %v1206 = vpop.f32.mrf.mxu0
      %1207 = vmatprep.mubr.f32.mxu0 0.0
      %1208 = vmatmul.mubr.f32.gmra.mxu0 %v1133
      %v1209 = vpop.f32.mrf.mxu0
      %v1210 = vadd.f32 0.0, %v1209
      %v1211 = vpop.f32.mrf.mxu0
      %1212 = vdwg.mxu0
      %s1213 = scalar_lea.vmem [#allocation2], 96
      %1214 = vst.msk [vmem:[%s1213 + $0x1] sm:$0xff] %vm214, %v1205
      %1215 = vst.msk [vmem:[%s1213 + $0x9] sm:$0xff] %vm214, %v1210
      %v1216 = vld [vmem:[#allocation2] sm:$0xff]
      %v1217 = vld [vmem:[#allocation2 + $0x8] sm:$0xff]
      %v1218 = vld [vmem:[#allocation2 + $0x18] sm:$0xff]
      %v1219 = vld [vmem:[#allocation2 + $0x20] sm:$0xff]
      %v1220 = vld [vmem:[#allocation2 + $0x30] sm:$0xff]
      %v1221 = vld [vmem:[#allocation2 + $0x38] sm:$0xff]
      %v1222 = vld [vmem:[#allocation2 + $0x48] sm:$0xff]
      %v1223 = vld [vmem:[#allocation2 + $0x50] sm:$0xff]
      %1224 = vst.msk [vmem:[#allocation3] sm:$0xff] %vm214, %v1216
      %1225 = vst.msk [vmem:[#allocation3 + $0x8] sm:$0xff] %vm214, %v1217
      %1226 = vst.msk [vmem:[#allocation3 + $0x10] sm:$0xff] %vm214, %v1218
      %1227 = vst.msk [vmem:[#allocation3 + $0x18] sm:$0xff] %vm214, %v1219
      %1228 = vst.msk [vmem:[#allocation3 + $0x20] sm:$0xff] %vm214, %v1220
      %1229 = vst.msk [vmem:[#allocation3 + $0x28] sm:$0xff] %vm214, %v1221
      %1230 = vst.msk [vmem:[#allocation3 + $0x30] sm:$0xff] %vm214, %v1222
      %1231 = vst.msk [vmem:[#allocation3 + $0x38] sm:$0xff] %vm214, %v1223
      %v1232 = vld [vmem:[#allocation2 + $0x1] sm:$0xff]
      %v1233 = vld [vmem:[#allocation2 + $0x9] sm:$0xff]
      %v1234 = vld [vmem:[#allocation2 + $0x19] sm:$0xff]
      %v1235 = vld [vmem:[#allocation2 + $0x21] sm:$0xff]
      %v1236 = vld [vmem:[#allocation2 + $0x31] sm:$0xff]
      %v1237 = vld [vmem:[#allocation2 + $0x39] sm:$0xff]
      %v1238 = vld [vmem:[#allocation2 + $0x49] sm:$0xff]
      %v1239 = vld [vmem:[#allocation2 + $0x51] sm:$0xff]
      %1248 = vrot.lane.b32.xlu0 %v1232, 8
      %v1249 = vpop.permute.xlu0 %1248
      %1250 = vrot.lane.b32.xlu0 %v1233, 8
      %v1251 = vpop.permute.xlu0 %1250
      %1252 = vrot.lane.b32.xlu0 %v1234, 8
      %v1253 = vpop.permute.xlu0 %1252
      %1254 = vrot.lane.b32.xlu0 %v1235, 8
      %v1255 = vpop.permute.xlu0 %1254
      %1256 = vrot.lane.b32.xlu0 %v1236, 8
      %v1257 = vpop.permute.xlu0 %1256
      %1258 = vrot.lane.b32.xlu0 %v1237, 8
      %v1259 = vpop.permute.xlu0 %1258
      %1260 = vrot.lane.b32.xlu0 %v1238, 8
      %v1261 = vpop.permute.xlu0 %1260
      %1262 = vrot.lane.b32.xlu0 %v1239, 8
      %v1263 = vpop.permute.xlu0 %1262
      %vm1272 = vcmask 130112
      %1273 = vst.msk [vmem:[#allocation3] sm:$0xff] %vm1272, %v1249
      %1274 = vst.msk [vmem:[#allocation3 + $0x8] sm:$0xff] %vm1272, %v1251
      %1275 = vst.msk [vmem:[#allocation3 + $0x10] sm:$0xff] %vm1272, %v1253
      %1276 = vst.msk [vmem:[#allocation3 + $0x18] sm:$0xff] %vm1272, %v1255
      %1277 = vst.msk [vmem:[#allocation3 + $0x20] sm:$0xff] %vm1272, %v1257
      %1278 = vst.msk [vmem:[#allocation3 + $0x28] sm:$0xff] %vm1272, %v1259
      %1279 = vst.msk [vmem:[#allocation3 + $0x30] sm:$0xff] %vm1272, %v1261
      %1280 = vst.msk [vmem:[#allocation3 + $0x38] sm:$0xff] %vm1272, %v1263
      %v1281 = vld [vmem:[#allocation2 + $0x2] sm:$0xff]
      %v1282 = vld [vmem:[#allocation2 + $0xa] sm:$0xff]
      %v1283 = vld [vmem:[#allocation2 + $0x1a] sm:$0xff]
      %v1284 = vld [vmem:[#allocation2 + $0x22] sm:$0xff]
      %v1285 = vld [vmem:[#allocation2 + $0x32] sm:$0xff]
      %v1286 = vld [vmem:[#allocation2 + $0x3a] sm:$0xff]
      %v1287 = vld [vmem:[#allocation2 + $0x4a] sm:$0xff]
      %v1288 = vld [vmem:[#allocation2 + $0x52] sm:$0xff]
      %1297 = vrot.lane.b32.xlu0 %v1281, 16
      %v1298 = vpop.permute.xlu0 %1297
      %1299 = vrot.lane.b32.xlu0 %v1282, 16
      %v1300 = vpop.permute.xlu0 %1299
      %1301 = vrot.lane.b32.xlu0 %v1283, 16
      %v1302 = vpop.permute.xlu0 %1301
      %1303 = vrot.lane.b32.xlu0 %v1284, 16
      %v1304 = vpop.permute.xlu0 %1303
      %1305 = vrot.lane.b32.xlu0 %v1285, 16
      %v1306 = vpop.permute.xlu0 %1305
      %1307 = vrot.lane.b32.xlu0 %v1286, 16
      %v1308 = vpop.permute.xlu0 %1307
      %1309 = vrot.lane.b32.xlu0 %v1287, 16
      %v1310 = vpop.permute.xlu0 %1309
      %1311 = vrot.lane.b32.xlu0 %v1288, 16
      %v1312 = vpop.permute.xlu0 %1311
      %vm1321 = vcmask 195712
      %1322 = vst.msk [vmem:[#allocation3] sm:$0xff] %vm1321, %v1298
      %1323 = vst.msk [vmem:[#allocation3 + $0x8] sm:$0xff] %vm1321, %v1300
      %1324 = vst.msk [vmem:[#allocation3 + $0x10] sm:$0xff] %vm1321, %v1302
      %1325 = vst.msk [vmem:[#allocation3 + $0x18] sm:$0xff] %vm1321, %v1304
      %1326 = vst.msk [vmem:[#allocation3 + $0x20] sm:$0xff] %vm1321, %v1306
      %1327 = vst.msk [vmem:[#allocation3 + $0x28] sm:$0xff] %vm1321, %v1308
      %1328 = vst.msk [vmem:[#allocation3 + $0x30] sm:$0xff] %vm1321, %v1310
      %1329 = vst.msk [vmem:[#allocation3 + $0x38] sm:$0xff] %vm1321, %v1312
      %v1330 = vld [vmem:[%s574] sm:$0xff]
      %v1331 = vld [vmem:[%s574 + $0x8] sm:$0xff]
      %v1332 = vld [vmem:[%s574 + $0x18] sm:$0xff]
      %v1333 = vld [vmem:[%s574 + $0x20] sm:$0xff]
      %v1334 = vld [vmem:[%s574 + $0x30] sm:$0xff]
      %v1335 = vld [vmem:[%s574 + $0x38] sm:$0xff]
      %v1336 = vld [vmem:[%s574 + $0x48] sm:$0xff]
      %v1337 = vld [vmem:[%s574 + $0x50] sm:$0xff]
      %1346 = vrot.lane.b32.xlu0 %v1330, 24
      %v1347 = vpop.permute.xlu0 %1346
      %1348 = vrot.lane.b32.xlu0 %v1331, 24
      %v1349 = vpop.permute.xlu0 %1348
      %1350 = vrot.lane.b32.xlu0 %v1332, 24
      %v1351 = vpop.permute.xlu0 %1350
      %1352 = vrot.lane.b32.xlu0 %v1333, 24
      %v1353 = vpop.permute.xlu0 %1352
      %1354 = vrot.lane.b32.xlu0 %v1334, 24
      %v1355 = vpop.permute.xlu0 %1354
      %1356 = vrot.lane.b32.xlu0 %v1335, 24
      %v1357 = vpop.permute.xlu0 %1356
      %1358 = vrot.lane.b32.xlu0 %v1336, 24
      %v1359 = vpop.permute.xlu0 %1358
      %1360 = vrot.lane.b32.xlu0 %v1337, 24
      %v1361 = vpop.permute.xlu0 %1360
      %vm1370 = vcmask 261312
      %1371 = vst.msk [vmem:[#allocation3] sm:$0xff] %vm1370, %v1347
      %1372 = vst.msk [vmem:[#allocation3 + $0x8] sm:$0xff] %vm1370, %v1349
      %1373 = vst.msk [vmem:[#allocation3 + $0x10] sm:$0xff] %vm1370, %v1351
      %1374 = vst.msk [vmem:[#allocation3 + $0x18] sm:$0xff] %vm1370, %v1353
      %1375 = vst.msk [vmem:[#allocation3 + $0x20] sm:$0xff] %vm1370, %v1355
      %1376 = vst.msk [vmem:[#allocation3 + $0x28] sm:$0xff] %vm1370, %v1357
      %1377 = vst.msk [vmem:[#allocation3 + $0x30] sm:$0xff] %vm1370, %v1359
      %1378 = vst.msk [vmem:[#allocation3 + $0x38] sm:$0xff] %vm1370, %v1361
      %v1379 = vld [vmem:[%s574 + $0x1] sm:$0xff]
      %v1380 = vld [vmem:[%s574 + $0x9] sm:$0xff]
      %v1381 = vld [vmem:[%s574 + $0x19] sm:$0xff]
      %v1382 = vld [vmem:[%s574 + $0x21] sm:$0xff]
      %v1383 = vld [vmem:[%s574 + $0x31] sm:$0xff]
      %v1384 = vld [vmem:[%s574 + $0x39] sm:$0xff]
      %v1385 = vld [vmem:[%s574 + $0x49] sm:$0xff]
      %v1386 = vld [vmem:[%s574 + $0x51] sm:$0xff]
      %1395 = vrot.lane.b32.xlu0 %v1379, 32
      %v1396 = vpop.permute.xlu0 %1395
      %1397 = vrot.lane.b32.xlu0 %v1380, 32
      %v1398 = vpop.permute.xlu0 %1397
      %1399 = vrot.lane.b32.xlu0 %v1381, 32
      %v1400 = vpop.permute.xlu0 %1399
      %1401 = vrot.lane.b32.xlu0 %v1382, 32
      %v1402 = vpop.permute.xlu0 %1401
      %1403 = vrot.lane.b32.xlu0 %v1383, 32
      %v1404 = vpop.permute.xlu0 %1403
      %1405 = vrot.lane.b32.xlu0 %v1384, 32
      %v1406 = vpop.permute.xlu0 %1405
      %1407 = vrot.lane.b32.xlu0 %v1385, 32
      %v1408 = vpop.permute.xlu0 %1407
      %1409 = vrot.lane.b32.xlu0 %v1386, 32
      %v1410 = vpop.permute.xlu0 %1409
      %vm1419 = vcmask 326912
      %1420 = vst.msk [vmem:[#allocation3] sm:$0xff] %vm1419, %v1396
      %1421 = vst.msk [vmem:[#allocation3 + $0x8] sm:$0xff] %vm1419, %v1398
      %1422 = vst.msk [vmem:[#allocation3 + $0x10] sm:$0xff] %vm1419, %v1400
      %1423 = vst.msk [vmem:[#allocation3 + $0x18] sm:$0xff] %vm1419, %v1402
      %1424 = vst.msk [vmem:[#allocation3 + $0x20] sm:$0xff] %vm1419, %v1404
      %1425 = vst.msk [vmem:[#allocation3 + $0x28] sm:$0xff] %vm1419, %v1406
      %1426 = vst.msk [vmem:[#allocation3 + $0x30] sm:$0xff] %vm1419, %v1408
      %1427 = vst.msk [vmem:[#allocation3 + $0x38] sm:$0xff] %vm1419, %v1410
      %v1428 = vld [vmem:[%s574 + $0x2] sm:$0xff]
      %v1429 = vld [vmem:[%s574 + $0xa] sm:$0xff]
      %v1430 = vld [vmem:[%s574 + $0x1a] sm:$0xff]
      %v1431 = vld [vmem:[%s574 + $0x22] sm:$0xff]
      %v1432 = vld [vmem:[%s574 + $0x32] sm:$0xff]
      %v1433 = vld [vmem:[%s574 + $0x3a] sm:$0xff]
      %v1434 = vld [vmem:[%s574 + $0x4a] sm:$0xff]
      %v1435 = vld [vmem:[%s574 + $0x52] sm:$0xff]
      %1444 = vrot.lane.b32.xlu0 %v1428, 40
      %v1445 = vpop.permute.xlu0 %1444
      %1446 = vrot.lane.b32.xlu0 %v1429, 40
      %v1447 = vpop.permute.xlu0 %1446
      %1448 = vrot.lane.b32.xlu0 %v1430, 40
      %v1449 = vpop.permute.xlu0 %1448
      %1450 = vrot.lane.b32.xlu0 %v1431, 40
      %v1451 = vpop.permute.xlu0 %1450
      %1452 = vrot.lane.b32.xlu0 %v1432, 40
      %v1453 = vpop.permute.xlu0 %1452
      %1454 = vrot.lane.b32.xlu0 %v1433, 40
      %v1455 = vpop.permute.xlu0 %1454
      %1456 = vrot.lane.b32.xlu0 %v1434, 40
      %v1457 = vpop.permute.xlu0 %1456
      %1458 = vrot.lane.b32.xlu0 %v1435, 40
      %v1459 = vpop.permute.xlu0 %1458
      %vm1468 = vcmask 392512
      %1469 = vst.msk [vmem:[#allocation3] sm:$0xff] %vm1468, %v1445
      %1470 = vst.msk [vmem:[#allocation3 + $0x8] sm:$0xff] %vm1468, %v1447
      %1471 = vst.msk [vmem:[#allocation3 + $0x10] sm:$0xff] %vm1468, %v1449
      %1472 = vst.msk [vmem:[#allocation3 + $0x18] sm:$0xff] %vm1468, %v1451
      %1473 = vst.msk [vmem:[#allocation3 + $0x20] sm:$0xff] %vm1468, %v1453
      %1474 = vst.msk [vmem:[#allocation3 + $0x28] sm:$0xff] %vm1468, %v1455
      %1475 = vst.msk [vmem:[#allocation3 + $0x30] sm:$0xff] %vm1468, %v1457
      %1476 = vst.msk [vmem:[#allocation3 + $0x38] sm:$0xff] %vm1468, %v1459
      %v1477 = vld [vmem:[%s787] sm:$0xff]
      %v1478 = vld [vmem:[%s787 + $0x8] sm:$0xff]
      %v1479 = vld [vmem:[%s787 + $0x18] sm:$0xff]
      %v1480 = vld [vmem:[%s787 + $0x20] sm:$0xff]
      %v1481 = vld [vmem:[%s787 + $0x30] sm:$0xff]
      %v1482 = vld [vmem:[%s787 + $0x38] sm:$0xff]
      %v1483 = vld [vmem:[%s787 + $0x48] sm:$0xff]
      %v1484 = vld [vmem:[%s787 + $0x50] sm:$0xff]
      %1493 = vrot.lane.b32.xlu0 %v1477, 48
      %v1494 = vpop.permute.xlu0 %1493
      %1495 = vrot.lane.b32.xlu0 %v1478, 48
      %v1496 = vpop.permute.xlu0 %1495
      %1497 = vrot.lane.b32.xlu0 %v1479, 48
      %v1498 = vpop.permute.xlu0 %1497
      %1499 = vrot.lane.b32.xlu0 %v1480, 48
      %v1500 = vpop.permute.xlu0 %1499
      %1501 = vrot.lane.b32.xlu0 %v1481, 48
      %v1502 = vpop.permute.xlu0 %1501
      %1503 = vrot.lane.b32.xlu0 %v1482, 48
      %v1504 = vpop.permute.xlu0 %1503
      %1505 = vrot.lane.b32.xlu0 %v1483, 48
      %v1506 = vpop.permute.xlu0 %1505
      %1507 = vrot.lane.b32.xlu0 %v1484, 48
      %v1508 = vpop.permute.xlu0 %1507
      %vm1517 = vcmask 458112
      %1518 = vst.msk [vmem:[#allocation3] sm:$0xff] %vm1517, %v1494
      %1519 = vst.msk [vmem:[#allocation3 + $0x8] sm:$0xff] %vm1517, %v1496
      %1520 = vst.msk [vmem:[#allocation3 + $0x10] sm:$0xff] %vm1517, %v1498
      %1521 = vst.msk [vmem:[#allocation3 + $0x18] sm:$0xff] %vm1517, %v1500
      %1522 = vst.msk [vmem:[#allocation3 + $0x20] sm:$0xff] %vm1517, %v1502
      %1523 = vst.msk [vmem:[#allocation3 + $0x28] sm:$0xff] %vm1517, %v1504
      %1524 = vst.msk [vmem:[#allocation3 + $0x30] sm:$0xff] %vm1517, %v1506
      %1525 = vst.msk [vmem:[#allocation3 + $0x38] sm:$0xff] %vm1517, %v1508
      %v1526 = vld [vmem:[%s787 + $0x1] sm:$0xff]
      %v1527 = vld [vmem:[%s787 + $0x9] sm:$0xff]
      %v1528 = vld [vmem:[%s787 + $0x19] sm:$0xff]
      %v1529 = vld [vmem:[%s787 + $0x21] sm:$0xff]
      %v1530 = vld [vmem:[%s787 + $0x31] sm:$0xff]
      %v1531 = vld [vmem:[%s787 + $0x39] sm:$0xff]
      %v1532 = vld [vmem:[%s787 + $0x49] sm:$0xff]
      %v1533 = vld [vmem:[%s787 + $0x51] sm:$0xff]
      %1542 = vrot.lane.b32.xlu0 %v1526, 56
      %v1543 = vpop.permute.xlu0 %1542
      %1544 = vrot.lane.b32.xlu0 %v1527, 56
      %v1545 = vpop.permute.xlu0 %1544
      %1546 = vrot.lane.b32.xlu0 %v1528, 56
      %v1547 = vpop.permute.xlu0 %1546
      %1548 = vrot.lane.b32.xlu0 %v1529, 56
      %v1549 = vpop.permute.xlu0 %1548
      %1550 = vrot.lane.b32.xlu0 %v1530, 56
      %v1551 = vpop.permute.xlu0 %1550
      %1552 = vrot.lane.b32.xlu0 %v1531, 56
      %v1553 = vpop.permute.xlu0 %1552
      %1554 = vrot.lane.b32.xlu0 %v1532, 56
      %v1555 = vpop.permute.xlu0 %1554
      %1556 = vrot.lane.b32.xlu0 %v1533, 56
      %v1557 = vpop.permute.xlu0 %1556
      %vm1566 = vcmask 523712
      %1567 = vst.msk [vmem:[#allocation3] sm:$0xff] %vm1566, %v1543
      %1568 = vst.msk [vmem:[#allocation3 + $0x8] sm:$0xff] %vm1566, %v1545
      %1569 = vst.msk [vmem:[#allocation3 + $0x10] sm:$0xff] %vm1566, %v1547
      %1570 = vst.msk [vmem:[#allocation3 + $0x18] sm:$0xff] %vm1566, %v1549
      %1571 = vst.msk [vmem:[#allocation3 + $0x20] sm:$0xff] %vm1566, %v1551
      %1572 = vst.msk [vmem:[#allocation3 + $0x28] sm:$0xff] %vm1566, %v1553
      %1573 = vst.msk [vmem:[#allocation3 + $0x30] sm:$0xff] %vm1566, %v1555
      %1574 = vst.msk [vmem:[#allocation3 + $0x38] sm:$0xff] %vm1566, %v1557
      %v1575 = vld [vmem:[%s787 + $0x2] sm:$0xff]
      %v1576 = vld [vmem:[%s787 + $0xa] sm:$0xff]
      %v1577 = vld [vmem:[%s787 + $0x1a] sm:$0xff]
      %v1578 = vld [vmem:[%s787 + $0x22] sm:$0xff]
      %v1579 = vld [vmem:[%s787 + $0x32] sm:$0xff]
      %v1580 = vld [vmem:[%s787 + $0x3a] sm:$0xff]
      %v1581 = vld [vmem:[%s787 + $0x4a] sm:$0xff]
      %v1582 = vld [vmem:[%s787 + $0x52] sm:$0xff]
      %1591 = vrot.lane.b32.xlu0 %v1575, 64
      %v1592 = vpop.permute.xlu0 %1591
      %1593 = vrot.lane.b32.xlu0 %v1576, 64
      %v1594 = vpop.permute.xlu0 %1593
      %1595 = vrot.lane.b32.xlu0 %v1577, 64
      %v1596 = vpop.permute.xlu0 %1595
      %1597 = vrot.lane.b32.xlu0 %v1578, 64
      %v1598 = vpop.permute.xlu0 %1597
      %1599 = vrot.lane.b32.xlu0 %v1579, 64
      %v1600 = vpop.permute.xlu0 %1599
      %1601 = vrot.lane.b32.xlu0 %v1580, 64
      %v1602 = vpop.permute.xlu0 %1601
      %1603 = vrot.lane.b32.xlu0 %v1581, 64
      %v1604 = vpop.permute.xlu0 %1603
      %1605 = vrot.lane.b32.xlu0 %v1582, 64
      %v1606 = vpop.permute.xlu0 %1605
      %vm1615 = vcmask 589312
      %1616 = vst.msk [vmem:[#allocation3] sm:$0xff] %vm1615, %v1592
      %1617 = vst.msk [vmem:[#allocation3 + $0x8] sm:$0xff] %vm1615, %v1594
      %1618 = vst.msk [vmem:[#allocation3 + $0x10] sm:$0xff] %vm1615, %v1596
      %1619 = vst.msk [vmem:[#allocation3 + $0x18] sm:$0xff] %vm1615, %v1598
      %1620 = vst.msk [vmem:[#allocation3 + $0x20] sm:$0xff] %vm1615, %v1600
      %1621 = vst.msk [vmem:[#allocation3 + $0x28] sm:$0xff] %vm1615, %v1602
      %1622 = vst.msk [vmem:[#allocation3 + $0x30] sm:$0xff] %vm1615, %v1604
      %1623 = vst.msk [vmem:[#allocation3 + $0x38] sm:$0xff] %vm1615, %v1606
      %v1624 = vld [vmem:[#allocation3] sm:$0xff]
      %v1625 = vld [vmem:[#allocation3 + $0x8] sm:$0xff]
      %v1626 = vld [vmem:[#allocation3 + $0x10] sm:$0xff]
      %v1627 = vld [vmem:[#allocation3 + $0x18] sm:$0xff]
      %v1628 = vld [vmem:[#allocation3 + $0x20] sm:$0xff]
      %v1629 = vld [vmem:[#allocation3 + $0x28] sm:$0xff]
      %v1630 = vld [vmem:[#allocation3 + $0x30] sm:$0xff]
      %v1631 = vld [vmem:[#allocation3 + $0x38] sm:$0xff]
      %v1632 = vld [vmem:[%s3] sm:$0xff]
      %v1633 = vld [vmem:[%s3 + $0x8] sm:$0xff]
      %v1634 = vld [vmem:[%s3 + $0x10] sm:$0xff]
      %v1635 = vld [vmem:[%s3 + $0x18] sm:$0xff]
      %v1636 = vld [vmem:[%s3 + $0x20] sm:$0xff]
      %v1637 = vld [vmem:[%s3 + $0x28] sm:$0xff]
      %v1638 = vld [vmem:[%s3 + $0x30] sm:$0xff]
      %v1639 = vld [vmem:[%s3 + $0x38] sm:$0xff]
      %v1640 = vld [vmem:[%s3 + $0x40] sm:$0xff]
      %vm1641 = vcmask 588800
      %v1643 = vsel %vm1641, %v1624, 0
      %v1646 = vsel %vm1641, %v1625, 0
      %v1649 = vsel %vm1641, %v1626, 0
      %v1652 = vsel %vm1641, %v1627, 0
      %v1655 = vsel %vm1641, %v1628, 0
      %v1658 = vsel %vm1641, %v1629, 0
      %v1661 = vsel %vm1641, %v1630, 0
      %v1664 = vsel %vm1641, %v1631, 0
      %1666 = vmatprep.subr.mxu0 0.0
      %1667 = vmatpush1.msra.mxu0 0.0
      %1668 = vmatprep.subr.mxu0 0.0
      %1669 = vmatpush1.msra.mxu0 0.0
      %1670 = vmatprep.subr.mxu0 0.0
      %1671 = vmatpush1.msra.mxu0 0.0
      %1672 = vmatprep.subr.mxu0 0.0
      %1673 = vmatpush1.msra.mxu0 0.0
      %1674 = vmatprep.subr.mxu0 0.0
      %1675 = vmatpush1.msra.mxu0 0.0
      %1676 = vmatprep.subr.mxu0 0.0
      %1677 = vmatpush1.msra.mxu0 0.0
      %1678 = vmatprep.subr.mxu0 0.0
      %1679 = vmatpush1.msra.mxu0 0.0
      %1680 = vmatprep.subr.mxu0 0.0
      %1681 = vmatpush1.msra.mxu0 %v1640
      %1682 = vmatprep.subr.mxu0 0.0
      %1683 = vmatpush1.msra.mxu0 %v1639
      %1684 = vmatprep.subr.mxu0 0.0
      %1685 = vmatpush1.msra.mxu0 %v1638
      %1686 = vmatprep.subr.mxu0 0.0
      %1687 = vmatpush1.msra.mxu0 %v1637
      %1688 = vmatprep.subr.mxu0 0.0
      %1689 = vmatpush1.msra.mxu0 %v1636
      %1690 = vmatprep.subr.mxu0 0.0
      %1691 = vmatpush1.msra.mxu0 %v1635
      %1692 = vmatprep.subr.mxu0 0.0
      %1693 = vmatpush1.msra.mxu0 %v1634
      %1694 = vmatprep.subr.mxu0 0.0
      %1695 = vmatpush1.msra.mxu0 %v1633
      %1696 = vmatprep.subr.mxu0 0.0
      %1697 = vmatpush1.msra.mxu0 %v1632
      %1698 = vmatprep.subr.mxu0 0.0
      %1699 = vmatpush2.msra.mxu0 0.0
      %1700 = vmatprep.subr.mxu0 0.0
      %1701 = vmatpush2.msra.mxu0 0.0
      %1702 = vmatprep.subr.mxu0 0.0
      %1703 = vmatpush2.msra.mxu0 0.0
      %1704 = vmatprep.subr.mxu0 0.0
      %1705 = vmatpush2.msra.mxu0 0.0
      %1706 = vmatprep.subr.mxu0 0.0
      %1707 = vmatpush2.msra.mxu0 0.0
      %1708 = vmatprep.subr.mxu0 0.0
      %1709 = vmatpush2.msra.mxu0 0.0
      %1710 = vmatprep.subr.mxu0 0.0
      %1711 = vmatpush2.msra.mxu0 0.0
      %1712 = vmatprep.subr.mxu0 0.0
      %1713 = vmatpush2.msra.mxu0 0.0
      %1714 = vmatprep.subr.mxu0 0.0
      %1715 = vmatpush2.msra.mxu0 0.0
      %1716 = vmatprep.subr.mxu0 0.0
      %1717 = vmatpush2.msra.mxu0 0.0
      %1718 = vmatprep.subr.mxu0 0.0
      %1719 = vmatpush2.msra.mxu0 0.0
      %1720 = vmatprep.subr.mxu0 0.0
      %1721 = vmatpush2.msra.mxu0 0.0
      %1722 = vmatprep.subr.mxu0 0.0
      %1723 = vmatpush2.msra.mxu0 0.0
      %1724 = vmatprep.subr.mxu0 0.0
      %1725 = vmatpush2.msra.mxu0 0.0
      %1726 = vmatprep.subr.mxu0 0.0
      %1727 = vmatpush2.msra.mxu0 0.0
      %1728 = vmatprep.subr.mxu0 0.0
      %1729 = vmatpush2.msra.mxu0 0.0
      %1730 = vmatprep.mubr.f32.mxu0 0.0
      %1731 = vmatmul.mubr.f32.gmra.mxu0 %v1643
      %v1732 = vpop.f32.mrf.mxu0
      %v1733 = vadd.f32 0.0, %v1732
      %v1734 = vpop.f32.mrf.mxu0
      %1735 = vmatprep.mubr.f32.mxu0 0.0
      %1736 = vmatmul.mubr.f32.gmra.mxu0 %v1646
      %v1737 = vpop.f32.mrf.mxu0
      %v1738 = vadd.f32 0.0, %v1737
      %v1739 = vpop.f32.mrf.mxu0
      %1740 = vmatprep.mubr.f32.mxu0 0.0
      %1741 = vmatmul.mubr.f32.gmra.mxu0 %v1649
      %v1742 = vpop.f32.mrf.mxu0
      %v1743 = vadd.f32 0.0, %v1742
      %v1744 = vpop.f32.mrf.mxu0
      %1745 = vmatprep.mubr.f32.mxu0 0.0
      %1746 = vmatmul.mubr.f32.gmra.mxu0 %v1652
      %v1747 = vpop.f32.mrf.mxu0
      %v1748 = vadd.f32 0.0, %v1747
      %v1749 = vpop.f32.mrf.mxu0
      %1750 = vmatprep.mubr.f32.mxu0 0.0
      %1751 = vmatmul.mubr.f32.gmra.mxu0 %v1655
      %v1752 = vpop.f32.mrf.mxu0
      %v1753 = vadd.f32 0.0, %v1752
      %v1754 = vpop.f32.mrf.mxu0
      %1755 = vmatprep.mubr.f32.mxu0 0.0
      %1756 = vmatmul.mubr.f32.gmra.mxu0 %v1658
      %v1757 = vpop.f32.mrf.mxu0
      %v1758 = vadd.f32 0.0, %v1757
      %v1759 = vpop.f32.mrf.mxu0
      %1760 = vmatprep.mubr.f32.mxu0 0.0
      %1761 = vmatmul.mubr.f32.gmra.mxu0 %v1661
      %v1762 = vpop.f32.mrf.mxu0
      %v1763 = vadd.f32 0.0, %v1762
      %v1764 = vpop.f32.mrf.mxu0
      %1765 = vmatprep.mubr.f32.mxu0 0.0
      %1766 = vmatmul.mubr.f32.gmra.mxu0 %v1664
      %v1767 = vpop.f32.mrf.mxu0
      %v1768 = vadd.f32 0.0, %v1767
      %v1769 = vpop.f32.mrf.mxu0
      %1770 = vdwg.mxu0
      %1771 = vst.msk [vmem:[%s197] sm:$0xff] %vm214, %v1733
      %1772 = vst.msk [vmem:[%s197 + $0x8] sm:$0xff] %vm214, %v1738
      %1773 = vst.msk [vmem:[%s197 + $0x10] sm:$0xff] %vm214, %v1743
      %1774 = vst.msk [vmem:[%s197 + $0x18] sm:$0xff] %vm214, %v1748
      %1775 = vst.msk [vmem:[%s197 + $0x20] sm:$0xff] %vm214, %v1753
      %1776 = vst.msk [vmem:[%s197 + $0x28] sm:$0xff] %vm214, %v1758
      %1777 = vst.msk [vmem:[%s197 + $0x30] sm:$0xff] %vm214, %v1763
      %1778 = vst.msk [vmem:[%s197 + $0x38] sm:$0xff] %vm214, %v1768
      %p1779 = scmp.lt.s32.totalorder %s15, 1
      %s1780 = scalar_select %p1779, %s15, 1
      %s1781 = smul.addr %s1780, 8
      %s1782 = smul.addr %s1781, 8
      %s1783 = scalar_lea.vmem %s4, %s1782
      // Predicated region
      $region37: #{c_attn_forward.1} parent=35 // pred_check
        %p1784 = pneg %p122
      $region38: #{c_attn_forward.1} parent=35 // pred_check_branch
        %1786 = sbr.rel (%p1784) target = $region40
      $region39: #{c_attn_forward.1} parent=35 // pred_region
        _
      $region40: #{c_attn_forward.1} parent=35 // pred_fallthru
        _
    $region36: #{c_attn_forward.1} parent=5 // pred_fallthru
      _
    %p1787 = scmp.le.s32.totalorder 2, %s10
    // Predicated region
    $region41: #{c_attn_forward.1} parent=5 // pred_check
      %p1788 = pneg %p1787
    $region42: #{c_attn_forward.1} parent=5 // pred_check_branch
      %1790 = sbr.rel (%p1788) target = $region44
    $region43: #{c_attn_forward.1} parent=5 // pred_region
      %s1791 = ssub.s32 %s10, 2
      // Predicated region
      $region45: #{c_attn_forward.1} parent=43 // pred_check
        %p1792 = pneg %p128
      $region46: #{c_attn_forward.1} parent=43 // pred_check_branch
        %1794 = sbr.rel (%p1792) target = $region48
      $region47: #{c_attn_forward.1} parent=43 // pred_region
        %p1795 = scmp.lt.s32.totalorder %s16, 1
        %s1796 = scalar_select %p1795, %s16, 1
        %s1797 = smul.addr %s1796, 8
        %s1798 = smul.addr %s1797, 8
        %s1799 = scalar_lea.vmem %s4, %s1798
      $region48: #{c_attn_forward.1} parent=43 // pred_fallthru
        _
    $region44: #{c_attn_forward.1} parent=5 // pred_fallthru
      _
  $region6: #{c_attn_forward.1} parent=0 // loop_footer
    %s14 = sadd.s32 1, %s10
  $region7: #{c_attn_forward.1} parent=0 // loop_footer_branch
    %9 = sbr.rel target = $region3
  $region8: #{c_attn_forward.1} parent=0 // loop_exit
    _

</llo_original>
